<compile_context>
chip_gen: v7x
topology: tpu7x:2x2x1
jax: 0.10.0
libtpu: 0.0.40
codegen_flags: <defaults>
</compile_context>

<pallas_src>
import functools

import jax
import jax.numpy as jnp
from jax.experimental import pallas as pl
from jax.experimental.pallas import tpu as pltpu

# ----------------------- model hyper-parameters (static) --------------------
INPUT_DIM = 32
HIDDEN_DIM = 64
OUTPUT_DIM = 16
N_LAYERS = 6
RESIDUAL_LAYER_INDEX = 4
NEG_SLOPE = 0.01

BATCH = 1024       # realistic batch so the grid has several parallel steps
TM = 256           # batch tile (multiple of 8; 4 grid steps at BATCH=1024)


def _round_up(a, m):
    return (a + m - 1) // m * m


def mlp_kernel(x_ref, w0_ref, b0_ref, wh_ref, bh_ref, wo_ref, bo_ref, out_ref,
               *, n_layers, residual_layer_index, negative_slope):
    """Fused MLP forward for one batch tile.

    x_ref  : (TM, D_in)   f32
    w0_ref : (D_in, H)    bf16 (or f32)     b0_ref : (1, H)  f32
    wh_ref : (L-1, H, H)  bf16 (or f32)     bh_ref : (L-1, 1, H) f32
    wo_ref : (H, D_out)   bf16 (or f32)     bo_ref : (1, D_out) f32
    out_ref: (TM, D_out)
    """
    h = x_ref[...].astype(jnp.float32)
    residual = None
    for i in range(n_layers):                       # static Python unroll (6 layers)
        if i == 0:
            w = w0_ref[...]
            b = b0_ref[...]
        else:
            w = wh_ref[i - 1]
            b = bh_ref[i - 1]
        # bf16 MXU operands, f32 accumulation; bias/activation stay in f32.
        h = jnp.dot(h.astype(w.dtype), w, preferred_element_type=jnp.float32) + b
        h = jnp.where(h > 0, h, negative_slope * h)
        if i == residual_layer_index - 1:
            residual = h
    h = h + residual                                # residual add (f32)
    out = jnp.dot(h.astype(wo_ref.dtype), wo_ref[...],
                  preferred_element_type=jnp.float32) + bo_ref[...]
    out_ref[...] = out.astype(out_ref.dtype)


def leaky_relu_mlp(x, params, *, n_layers=N_LAYERS,
                   residual_layer_index=RESIDUAL_LAYER_INDEX,
                   negative_slope=NEG_SLOPE, tm=TM,
                   matmul_dtype=jnp.bfloat16):
    assert 1 <= residual_layer_index <= n_layers, \
        "residual_layer_index must be in [1, n_layers]"

    w0, b0, wh, bh, wo, bo = params
    B, d_in = x.shape
    d_hid = w0.shape[1]
    d_out = wo.shape[1]

    # Cast matmul weights once at the call site (halves weight DMA bytes and
    # feeds the MXU its bf16 fast path); biases stay f32 for f32 elementwise.
    if matmul_dtype is not None:
        w0 = w0.astype(matmul_dtype)
        wh = wh.astype(matmul_dtype)
        wo = wo.astype(matmul_dtype)

    # Batch tiling: clamp the tile to the (8-aligned) batch and pad the batch
    # to a multiple of the tile so every grid step is full.
    tm = max(8, min(tm, _round_up(B, 8)))
    b_pad = _round_up(B, tm)
    if b_pad != B:
        x = jnp.pad(x, ((0, b_pad - B), (0, 0)))

    grid = (b_pad // tm,)

    kernel = functools.partial(
        mlp_kernel,
        n_layers=n_layers,
        residual_layer_index=residual_layer_index,
        negative_slope=negative_slope,
    )

    flops = 2 * b_pad * (d_in * d_hid
                         + (n_layers - 1) * d_hid * d_hid
                         + d_hid * d_out)
    bytes_accessed = (
        x.size * x.dtype.itemsize
        + sum(a.size * a.dtype.itemsize for a in (w0, b0, wh, bh, wo, bo))
        + b_pad * d_out * x.dtype.itemsize)

    out = pl.pallas_call(
        kernel,
        out_shape=jax.ShapeDtypeStruct((b_pad, d_out), x.dtype),
        grid_spec=pltpu.PrefetchScalarGridSpec(
            num_scalar_prefetch=0,
            grid=grid,
            in_specs=[
                pl.BlockSpec((tm, d_in), lambda i: (i, 0)),                       # x
                pl.BlockSpec((d_in, d_hid), lambda i: (0, 0)),                    # w0
                pl.BlockSpec((1, d_hid), lambda i: (0, 0)),                       # b0
                pl.BlockSpec((n_layers - 1, d_hid, d_hid), lambda i: (0, 0, 0)),  # wh
                pl.BlockSpec((n_layers - 1, 1, d_hid), lambda i: (0, 0, 0)),      # bh
                pl.BlockSpec((d_hid, d_out), lambda i: (0, 0)),                   # wo
                pl.BlockSpec((1, d_out), lambda i: (0, 0)),                       # bo
            ],
            out_specs=pl.BlockSpec((tm, d_out), lambda i: (i, 0)),
        ),
        compiler_params=pltpu.CompilerParams(
            dimension_semantics=("parallel",),       # shard batch tiles across TCs (v7x)
            vmem_limit_bytes=32 * 1024 * 1024,       # headroom for large TM sweeps
        ),
        cost_estimate=pl.CostEstimate(
            flops=flops, transcendentals=0, bytes_accessed=bytes_accessed),
    )(x, w0, b0, wh, bh, wo, bo)

    return out[:B]


# -------------------------- deterministic init ------------------------------
def init_params(key, d_in, d_hid, d_out, n_layers):
    """PyTorch-Linear-style uniform(-1/sqrt(fan_in), 1/sqrt(fan_in)) init."""
    ks = jax.random.split(key, 2 * (n_layers + 1))

    def lin(kw, kb, fan_in, fan_out):
        bound = 1.0 / jnp.sqrt(fan_in)
        w = jax.random.uniform(kw, (fan_in, fan_out), jnp.float32, -bound, bound)
        b = jax.random.uniform(kb, (1, fan_out), jnp.float32, -bound, bound)
        return w, b

    w0, b0 = lin(ks[0], ks[1], d_in, d_hid)
    whs, bhs = [], []
    for i in range(1, n_layers):
        w, b = lin(ks[2 * i], ks[2 * i + 1], d_hid, d_hid)
        whs.append(w[None])
        bhs.append(b[None])
    wh = jnp.concatenate(whs, axis=0)               # (L-1, H, H)
    bh = jnp.concatenate(bhs, axis=0)               # (L-1, 1, H)
    wo, bo = lin(ks[2 * n_layers], ks[2 * n_layers + 1], d_hid, d_out)
    return w0, b0, wh, bh, wo, bo


# ------------------------------ JAX reference --------------------------------
def reference_forward(x, params, *, n_layers=N_LAYERS,
                      residual_layer_index=RESIDUAL_LAYER_INDEX,
                      negative_slope=NEG_SLOPE, matmul_dtype=jnp.bfloat16):
    """Same math as the kernel (bf16 matmul operands, f32 accumulation)."""
    w0, b0, wh, bh, wo, bo = params
    if matmul_dtype is not None:
        w0 = w0.astype(matmul_dtype)
        wh = wh.astype(matmul_dtype)
        wo = wo.astype(matmul_dtype)
    h = x.astype(jnp.float32)
    residual = None
    for i in range(n_layers):
        if i == 0:
            w, b = w0, b0
        else:
            w, b = wh[i - 1], bh[i - 1]
        h = jnp.dot(h.astype(w.dtype), w, preferred_element_type=jnp.float32) + b
        h = jnp.where(h > 0, h, negative_slope * h)
        if i == residual_layer_index - 1:
            residual = h
    h = h + residual
    return jnp.dot(h.astype(wo.dtype), wo, preferred_element_type=jnp.float32) + bo


if __name__ == "__main__":
    key = jax.random.PRNGKey(0)
    kx, kp = jax.random.split(key)

    x = jax.random.normal(kx, (BATCH, INPUT_DIM), dtype=jnp.float32)
    params = init_params(kp, INPUT_DIM, HIDDEN_DIM, OUTPUT_DIM, N_LAYERS)

    out = leaky_relu_mlp(x, params)
    out = jax.block_until_ready(out)

    ref = reference_forward(x, params)
    assert out.shape == (BATCH, OUTPUT_DIM)
    assert jnp.allclose(out, ref, atol=2e-3, rtol=2e-3), "mismatch vs JAX reference"

    print("KERNEL_OK")
</pallas_src>

<mosaic_0001>
module attributes {stable_mosaic.version = 11 : i64} {
  func.func @mlp_kernel(%arg0: i32, %arg1: memref<256x32xf32, #tpu.memory_space<vmem>>, %arg2: memref<32x64xbf16, #tpu.memory_space<vmem>>, %arg3: memref<1x64xf32, #tpu.memory_space<vmem>>, %arg4: memref<5x64x64xbf16, #tpu.memory_space<vmem>>, %arg5: memref<5x1x64xf32, #tpu.memory_space<vmem>>, %arg6: memref<64x16xbf16, #tpu.memory_space<vmem>>, %arg7: memref<1x16xf32, #tpu.memory_space<vmem>>, %arg8: memref<256x16xf32, #tpu.memory_space<vmem>>) attributes {dimension_semantics = [#tpu.dimension_semantics<parallel>], iteration_bounds = array<i64: 4>, scalar_prefetch = 0 : i64, scratch_operands = 0 : i64, tpu.core_type = #tpu.core_type<tc>, window_params = [{transform_indices = @transform_0, window_bounds = array<i64: 256, 32>}, {pipeline_mode = #tpu.pipeline_mode<synchronous>, transform_indices = @transform_1, window_bounds = array<i64: 32, 64>}, {pipeline_mode = #tpu.pipeline_mode<synchronous>, transform_indices = @transform_2, window_bounds = array<i64: 1, 64>}, {pipeline_mode = #tpu.pipeline_mode<synchronous>, transform_indices = @transform_3, window_bounds = array<i64: 5, 64, 64>}, {pipeline_mode = #tpu.pipeline_mode<synchronous>, transform_indices = @transform_4, window_bounds = array<i64: 5, 1, 64>}, {pipeline_mode = #tpu.pipeline_mode<synchronous>, transform_indices = @transform_5, window_bounds = array<i64: 64, 16>}, {pipeline_mode = #tpu.pipeline_mode<synchronous>, transform_indices = @transform_6, window_bounds = array<i64: 1, 16>}, {transform_indices = @transform_7, window_bounds = array<i64: 256, 16>}]} {
    %c0 = arith.constant 0 : index
    %c0_0 = arith.constant 0 : index
    %0 = vector.load %arg1[%c0, %c0_0] : memref<256x32xf32, #tpu.memory_space<vmem>>, vector<256x32xf32>
    %c0_1 = arith.constant 0 : index
    %c0_2 = arith.constant 0 : index
    %1 = vector.load %arg2[%c0_1, %c0_2] : memref<32x64xbf16, #tpu.memory_space<vmem>>, vector<32x64xbf16>
    %c0_3 = arith.constant 0 : index
    %c0_4 = arith.constant 0 : index
    %2 = vector.load %arg3[%c0_3, %c0_4] : memref<1x64xf32, #tpu.memory_space<vmem>>, vector<1x64xf32>
    %3 = arith.truncf %0 : vector<256x32xf32> to vector<256x32xbf16>
    %cst = arith.constant dense<0.000000e+00> : vector<256x64xf32>
    %4 = tpu.matmul %3, %1, %cst {dimension_numbers = #tpu.dot_dimension_numbers<[1], [0], [0], [1], [0, 0, 1, 1], [], []>} : vector<256x32xbf16>, vector<32x64xbf16>, vector<256x64xf32> -> vector<256x64xf32>
    %5 = vector.broadcast %2 : vector<1x64xf32> to vector<256x64xf32>
    %6 = arith.addf %4, %5 : vector<256x64xf32>
    %cst_5 = arith.constant 0.000000e+00 : f32
    %7 = vector.broadcast %cst_5 : f32 to vector<256x64xf32>
    %8 = arith.cmpf ogt, %6, %7 : vector<256x64xf32>
    %cst_6 = arith.constant 0.00999999977 : f32
    %9 = vector.broadcast %cst_6 : f32 to vector<256x64xf32>
    %10 = arith.mulf %9, %6 : vector<256x64xf32>
    %11 = arith.select %8, %6, %10 : vector<256x64xi1>, vector<256x64xf32>
    %c0_7 = arith.constant 0 : index
    %c0_8 = arith.constant 0 : index
    %c0_9 = arith.constant 0 : index
    %12 = vector.load %arg4[%c0_7, %c0_8, %c0_9] : memref<5x64x64xbf16, #tpu.memory_space<vmem>>, vector<1x64x64xbf16>
    %13 = vector.shape_cast %12 : vector<1x64x64xbf16> to vector<64x64xbf16>
    %c0_10 = arith.constant 0 : index
    %c0_11 = arith.constant 0 : index
    %c0_12 = arith.constant 0 : index
    %14 = vector.load %arg5[%c0_10, %c0_11, %c0_12] : memref<5x1x64xf32, #tpu.memory_space<vmem>>, vector<1x1x64xf32>
    %15 = vector.shape_cast %14 : vector<1x1x64xf32> to vector<1x64xf32>
    %16 = arith.truncf %11 : vector<256x64xf32> to vector<256x64xbf16>
    %cst_13 = arith.constant dense<0.000000e+00> : vector<256x64xf32>
    %17 = tpu.matmul %16, %13, %cst_13 {dimension_numbers = #tpu.dot_dimension_numbers<[1], [0], [0], [1], [0, 0, 1, 1], [], []>} : vector<256x64xbf16>, vector<64x64xbf16>, vector<256x64xf32> -> vector<256x64xf32>
    %18 = vector.broadcast %15 : vector<1x64xf32> to vector<256x64xf32>
    %19 = arith.addf %17, %18 : vector<256x64xf32>
    %cst_14 = arith.constant 0.000000e+00 : f32
    %20 = vector.broadcast %cst_14 : f32 to vector<256x64xf32>
    %21 = arith.cmpf ogt, %19, %20 : vector<256x64xf32>
    %cst_15 = arith.constant 0.00999999977 : f32
    %22 = vector.broadcast %cst_15 : f32 to vector<256x64xf32>
    %23 = arith.mulf %22, %19 : vector<256x64xf32>
    %24 = arith.select %21, %19, %23 : vector<256x64xi1>, vector<256x64xf32>
    %c1 = arith.constant 1 : index
    %c0_16 = arith.constant 0 : index
    %c0_17 = arith.constant 0 : index
    %25 = vector.load %arg4[%c1, %c0_16, %c0_17] : memref<5x64x64xbf16, #tpu.memory_space<vmem>>, vector<1x64x64xbf16>
    %26 = vector.shape_cast %25 : vector<1x64x64xbf16> to vector<64x64xbf16>
    %c1_18 = arith.constant 1 : index
    %c0_19 = arith.constant 0 : index
    %c0_20 = arith.constant 0 : index
    %27 = vector.load %arg5[%c1_18, %c0_19, %c0_20] : memref<5x1x64xf32, #tpu.memory_space<vmem>>, vector<1x1x64xf32>
    %28 = vector.shape_cast %27 : vector<1x1x64xf32> to vector<1x64xf32>
    %29 = arith.truncf %24 : vector<256x64xf32> to vector<256x64xbf16>
    %cst_21 = arith.constant dense<0.000000e+00> : vector<256x64xf32>
    %30 = tpu.matmul %29, %26, %cst_21 {dimension_numbers = #tpu.dot_dimension_numbers<[1], [0], [0], [1], [0, 0, 1, 1], [], []>} : vector<256x64xbf16>, vector<64x64xbf16>, vector<256x64xf32> -> vector<256x64xf32>
    %31 = vector.broadcast %28 : vector<1x64xf32> to vector<256x64xf32>
    %32 = arith.addf %30, %31 : vector<256x64xf32>
    %cst_22 = arith.constant 0.000000e+00 : f32
    %33 = vector.broadcast %cst_22 : f32 to vector<256x64xf32>
    %34 = arith.cmpf ogt, %32, %33 : vector<256x64xf32>
    %cst_23 = arith.constant 0.00999999977 : f32
    %35 = vector.broadcast %cst_23 : f32 to vector<256x64xf32>
    %36 = arith.mulf %35, %32 : vector<256x64xf32>
    %37 = arith.select %34, %32, %36 : vector<256x64xi1>, vector<256x64xf32>
    %c2 = arith.constant 2 : index
    %c0_24 = arith.constant 0 : index
    %c0_25 = arith.constant 0 : index
    %38 = vector.load %arg4[%c2, %c0_24, %c0_25] : memref<5x64x64xbf16, #tpu.memory_space<vmem>>, vector<1x64x64xbf16>
    %39 = vector.shape_cast %38 : vector<1x64x64xbf16> to vector<64x64xbf16>
    %c2_26 = arith.constant 2 : index
    %c0_27 = arith.constant 0 : index
    %c0_28 = arith.constant 0 : index
    %40 = vector.load %arg5[%c2_26, %c0_27, %c0_28] : memref<5x1x64xf32, #tpu.memory_space<vmem>>, vector<1x1x64xf32>
    %41 = vector.shape_cast %40 : vector<1x1x64xf32> to vector<1x64xf32>
    %42 = arith.truncf %37 : vector<256x64xf32> to vector<256x64xbf16>
    %cst_29 = arith.constant dense<0.000000e+00> : vector<256x64xf32>
    %43 = tpu.matmul %42, %39, %cst_29 {dimension_numbers = #tpu.dot_dimension_numbers<[1], [0], [0], [1], [0, 0, 1, 1], [], []>} : vector<256x64xbf16>, vector<64x64xbf16>, vector<256x64xf32> -> vector<256x64xf32>
    %44 = vector.broadcast %41 : vector<1x64xf32> to vector<256x64xf32>
    %45 = arith.addf %43, %44 : vector<256x64xf32>
    %cst_30 = arith.constant 0.000000e+00 : f32
    %46 = vector.broadcast %cst_30 : f32 to vector<256x64xf32>
    %47 = arith.cmpf ogt, %45, %46 : vector<256x64xf32>
    %cst_31 = arith.constant 0.00999999977 : f32
    %48 = vector.broadcast %cst_31 : f32 to vector<256x64xf32>
    %49 = arith.mulf %48, %45 : vector<256x64xf32>
    %50 = arith.select %47, %45, %49 : vector<256x64xi1>, vector<256x64xf32>
    %c3 = arith.constant 3 : index
    %c0_32 = arith.constant 0 : index
    %c0_33 = arith.constant 0 : index
    %51 = vector.load %arg4[%c3, %c0_32, %c0_33] : memref<5x64x64xbf16, #tpu.memory_space<vmem>>, vector<1x64x64xbf16>
    %52 = vector.shape_cast %51 : vector<1x64x64xbf16> to vector<64x64xbf16>
    %c3_34 = arith.constant 3 : index
    %c0_35 = arith.constant 0 : index
    %c0_36 = arith.constant 0 : index
    %53 = vector.load %arg5[%c3_34, %c0_35, %c0_36] : memref<5x1x64xf32, #tpu.memory_space<vmem>>, vector<1x1x64xf32>
    %54 = vector.shape_cast %53 : vector<1x1x64xf32> to vector<1x64xf32>
    %55 = arith.truncf %50 : vector<256x64xf32> to vector<256x64xbf16>
    %cst_37 = arith.constant dense<0.000000e+00> : vector<256x64xf32>
    %56 = tpu.matmul %55, %52, %cst_37 {dimension_numbers = #tpu.dot_dimension_numbers<[1], [0], [0], [1], [0, 0, 1, 1], [], []>} : vector<256x64xbf16>, vector<64x64xbf16>, vector<256x64xf32> -> vector<256x64xf32>
    %57 = vector.broadcast %54 : vector<1x64xf32> to vector<256x64xf32>
    %58 = arith.addf %56, %57 : vector<256x64xf32>
    %cst_38 = arith.constant 0.000000e+00 : f32
    %59 = vector.broadcast %cst_38 : f32 to vector<256x64xf32>
    %60 = arith.cmpf ogt, %58, %59 : vector<256x64xf32>
    %cst_39 = arith.constant 0.00999999977 : f32
    %61 = vector.broadcast %cst_39 : f32 to vector<256x64xf32>
    %62 = arith.mulf %61, %58 : vector<256x64xf32>
    %63 = arith.select %60, %58, %62 : vector<256x64xi1>, vector<256x64xf32>
    %c4 = arith.constant 4 : index
    %c0_40 = arith.constant 0 : index
    %c0_41 = arith.constant 0 : index
    %64 = vector.load %arg4[%c4, %c0_40, %c0_41] : memref<5x64x64xbf16, #tpu.memory_space<vmem>>, vector<1x64x64xbf16>
    %65 = vector.shape_cast %64 : vector<1x64x64xbf16> to vector<64x64xbf16>
    %c4_42 = arith.constant 4 : index
    %c0_43 = arith.constant 0 : index
    %c0_44 = arith.constant 0 : index
    %66 = vector.load %arg5[%c4_42, %c0_43, %c0_44] : memref<5x1x64xf32, #tpu.memory_space<vmem>>, vector<1x1x64xf32>
    %67 = vector.shape_cast %66 : vector<1x1x64xf32> to vector<1x64xf32>
    %68 = arith.truncf %63 : vector<256x64xf32> to vector<256x64xbf16>
    %cst_45 = arith.constant dense<0.000000e+00> : vector<256x64xf32>
    %69 = tpu.matmul %68, %65, %cst_45 {dimension_numbers = #tpu.dot_dimension_numbers<[1], [0], [0], [1], [0, 0, 1, 1], [], []>} : vector<256x64xbf16>, vector<64x64xbf16>, vector<256x64xf32> -> vector<256x64xf32>
    %70 = vector.broadcast %67 : vector<1x64xf32> to vector<256x64xf32>
    %71 = arith.addf %69, %70 : vector<256x64xf32>
    %cst_46 = arith.constant 0.000000e+00 : f32
    %72 = vector.broadcast %cst_46 : f32 to vector<256x64xf32>
    %73 = arith.cmpf ogt, %71, %72 : vector<256x64xf32>
    %cst_47 = arith.constant 0.00999999977 : f32
    %74 = vector.broadcast %cst_47 : f32 to vector<256x64xf32>
    %75 = arith.mulf %74, %71 : vector<256x64xf32>
    %76 = arith.select %73, %71, %75 : vector<256x64xi1>, vector<256x64xf32>
    %77 = arith.addf %76, %50 : vector<256x64xf32>
    %78 = arith.truncf %77 : vector<256x64xf32> to vector<256x64xbf16>
    %c0_48 = arith.constant 0 : index
    %c0_49 = arith.constant 0 : index
    %79 = vector.load %arg6[%c0_48, %c0_49] : memref<64x16xbf16, #tpu.memory_space<vmem>>, vector<64x16xbf16>
    %cst_50 = arith.constant dense<0.000000e+00> : vector<256x16xf32>
    %80 = tpu.matmul %78, %79, %cst_50 {dimension_numbers = #tpu.dot_dimension_numbers<[1], [0], [0], [1], [0, 0, 1, 1], [], []>} : vector<256x64xbf16>, vector<64x16xbf16>, vector<256x16xf32> -> vector<256x16xf32>
    %c0_51 = arith.constant 0 : index
    %c0_52 = arith.constant 0 : index
    %81 = vector.load %arg7[%c0_51, %c0_52] : memref<1x16xf32, #tpu.memory_space<vmem>>, vector<1x16xf32>
    %82 = vector.broadcast %81 : vector<1x16xf32> to vector<256x16xf32>
    %83 = arith.addf %80, %82 : vector<256x16xf32>
    %c0_53 = arith.constant 0 : index
    %c0_54 = arith.constant 0 : index
    %84 = vector.load %arg8[%c0_53, %c0_54] : memref<256x16xf32, #tpu.memory_space<vmem>>, vector<256x16xf32>
    tpu.vector_store %arg8[%c0_53, %c0_54], %83 {strides = array<i32>} : memref<256x16xf32, #tpu.memory_space<vmem>>, vector<256x16xf32>,
    return
  }
  func.func @transform_0(%arg0: i32) -> (i32, i32) {
    %c0_i32 = arith.constant 0 : i32
    %c0_i32_0 = arith.constant 0 : i32
    return %arg0, %c0_i32 : i32, i32
  }
  func.func @transform_1(%arg0: i32) -> (i32, i32) {
    %c0_i32 = arith.constant 0 : i32
    %c0_i32_0 = arith.constant 0 : i32
    %c0_i32_1 = arith.constant 0 : i32
    return %c0_i32, %c0_i32_0 : i32, i32
  }
  func.func @transform_2(%arg0: i32) -> (i32, i32) {
    %c0_i32 = arith.constant 0 : i32
    %c0_i32_0 = arith.constant 0 : i32
    %c0_i32_1 = arith.constant 0 : i32
    return %c0_i32, %c0_i32_0 : i32, i32
  }
  func.func @transform_3(%arg0: i32) -> (i32, i32, i32) {
    %c0_i32 = arith.constant 0 : i32
    %c0_i32_0 = arith.constant 0 : i32
    %c0_i32_1 = arith.constant 0 : i32
    %c0_i32_2 = arith.constant 0 : i32
    return %c0_i32, %c0_i32_0, %c0_i32_1 : i32, i32, i32
  }
  func.func @transform_4(%arg0: i32) -> (i32, i32, i32) {
    %c0_i32 = arith.constant 0 : i32
    %c0_i32_0 = arith.constant 0 : i32
    %c0_i32_1 = arith.constant 0 : i32
    %c0_i32_2 = arith.constant 0 : i32
    return %c0_i32, %c0_i32_0, %c0_i32_1 : i32, i32, i32
  }
  func.func @transform_5(%arg0: i32) -> (i32, i32) {
    %c0_i32 = arith.constant 0 : i32
    %c0_i32_0 = arith.constant 0 : i32
    %c0_i32_1 = arith.constant 0 : i32
    return %c0_i32, %c0_i32_0 : i32, i32
  }
  func.func @transform_6(%arg0: i32) -> (i32, i32) {
    %c0_i32 = arith.constant 0 : i32
    %c0_i32_0 = arith.constant 0 : i32
    %c0_i32_1 = arith.constant 0 : i32
    return %c0_i32, %c0_i32_0 : i32, i32
  }
  func.func @transform_7(%arg0: i32) -> (i32, i32) {
    %c0_i32 = arith.constant 0 : i32
    %c0_i32_0 = arith.constant 0 : i32
    return %arg0, %c0_i32 : i32, i32
  }
}

</mosaic_0001>

<llo_original>
// kernel: tpu_custom_call.1
$region0: #{tpu_custom_call.1}
  #allocation0 [shape = 'u32[]', space=smem, size = 0x4, offset = 0x4, fixed_abs, tag = 'smem constant byte address 0x4 - core index']
  #allocation1 [shape = 'u32[144,128]{1,0:T(1,128)}', space=vmem, size = 0x12000, scoped, tag = 'internal scratch']
  %s0 = inlined_call_operand.vmem [shape: f32[1024,32], index: 0, kind: input, shape index: {}]
  %s1 = inlined_call_operand.vmem [shape: bf16[32,64], index: 1, kind: input, shape index: {}]
  %s2 = inlined_call_operand.vmem [shape: f32[1,64], index: 2, kind: input, shape index: {}]
  %s3 = inlined_call_operand.vmem [shape: bf16[5,64,64], index: 3, kind: input, shape index: {}]
  %s4 = inlined_call_operand.vmem [shape: f32[5,1,64], index: 4, kind: input, shape index: {}]
  %s5 = inlined_call_operand.vmem [shape: bf16[64,16], index: 5, kind: input, shape index: {}]
  %s6 = inlined_call_operand.vmem [shape: f32[1,16], index: 6, kind: input, shape index: {}]
  %s7 = inlined_call_operand.vmem [shape: f32[1024,16], index: 7, kind: output, shape index: {}]
  %s8 = sld [smem:[#allocation0]]
  $region61: #{tpu_custom_call.1} parent=0
    _
  %s10 = ssub.s32 1, %s8
  %s11 = scalar_select 0, %s10, %s8
  loop: start=0, step=1, limit=6
  $region2: #{tpu_custom_call.1} parent=0 // loop_pre_header
    _
  $region3: #{tpu_custom_call.1} parent=0 // loop_header
    %s13 = sphi 0, %s17
    %p14 = scmp.ge.s32.totalorder %s13, 6
    %s23 = sphi 0, %s25
    %s26 = sphi 0, %s23
    %s27 = sphi 0, %s26
    %s43 = sphi 0, %s27
    %s47 = sphi 0, %s47
    %s49 = sphi 0, %s47
    %s50 = sphi 0, %s49
    %s64 = sphi 0, %s50
    %s68 = sphi 0, %s68
    %s70 = sphi 0, %s68
    %s71 = sphi 0, %s70
    %s85 = sphi 0, %s71
    %s89 = sphi 0, %s89
    %s91 = sphi 0, %s89
    %s92 = sphi 0, %s91
    %s106 = sphi 0, %s92
    %s110 = sphi 0, %s110
    %s112 = sphi 0, %s110
    %s113 = sphi 0, %s112
    %s127 = sphi 0, %s113
    %s131 = sphi 0, %s131
    %s133 = sphi 0, %s131
    %s134 = sphi 0, %s133
    %s148 = sphi 0, %s134
    %s152 = sphi 0, %s152
    %s154 = sphi 0, %s152
    %s155 = sphi 0, %s154
    %s169 = sphi 0, %s155
    %s175 = sphi 0, %s177
    %s178 = sphi 0, %s175
    %s179 = sphi 0, %s178
    %s195 = sphi 0, %s179
  $region4: #{tpu_custom_call.1} parent=0 // loop_header_branch
    %16 = sbr.rel (%p14) target = $region8
  $region5: #{tpu_custom_call.1} parent=0 // loop_body
    %s18 = ssub.s32 %s13, 1
    %s19 = ssub.s32 %s13, 2
    %s20 = sadd.s32 %s13, 1
    %s21 = ssub.s32 %s13, %s20
    %p22 = scmp.eq.s32.totalorder %s21, 0
    %s24 = sadd.s32 %s23, 1
    %s25 = scalar_select %p22, %s23, %s24
    %p28 = pneg %p22
    %p29 = scmp.eq.s32.totalorder %s13, 3
    %p30 = por %p28, %p29
    %p31 = scmp.ne.s32.totalorder %s23, %s26
    %p32 = scmp.eq.s32.totalorder %s13, 0
    %p33 = por %p31, %p32
    %p34 = scmp.ne.s32.totalorder %s23, %s26
    %p35 = scmp.eq.s32.totalorder %s18, 3
    %p36 = por %p34, %p35
    %p37 = scmp.ne.s32.totalorder %s26, %s27
    %p38 = scmp.eq.s32.totalorder %s18, 0
    %p39 = por %p37, %p38
    %p40 = scmp.ne.s32.totalorder %s26, %s27
    %p41 = scmp.eq.s32.totalorder %s19, 3
    %p42 = por %p40, %p41
    %p44 = scmp.ne.s32.totalorder %s27, %s43
    %p45 = scmp.eq.s32.totalorder %s19, 0
    %p46 = por %p44, %p45
    %s48 = sadd.s32 %s47, 1
    %p51 = scmp.eq.s32.totalorder %s13, 3
    %p52 = scmp.ne.s32.totalorder %s47, %s49
    %p53 = scmp.eq.s32.totalorder %s13, 0
    %p54 = por %p52, %p53
    %p55 = scmp.ne.s32.totalorder %s47, %s49
    %p56 = scmp.eq.s32.totalorder %s18, 3
    %p57 = por %p55, %p56
    %p58 = scmp.ne.s32.totalorder %s49, %s50
    %p59 = scmp.eq.s32.totalorder %s18, 0
    %p60 = por %p58, %p59
    %p61 = scmp.ne.s32.totalorder %s49, %s50
    %p62 = scmp.eq.s32.totalorder %s19, 3
    %p63 = por %p61, %p62
    %p65 = scmp.ne.s32.totalorder %s50, %s64
    %p66 = scmp.eq.s32.totalorder %s19, 0
    %p67 = por %p65, %p66
    %s69 = sadd.s32 %s68, 1
    %p72 = scmp.eq.s32.totalorder %s13, 3
    %p73 = scmp.ne.s32.totalorder %s68, %s70
    %p74 = scmp.eq.s32.totalorder %s13, 0
    %p75 = por %p73, %p74
    %p76 = scmp.ne.s32.totalorder %s68, %s70
    %p77 = scmp.eq.s32.totalorder %s18, 3
    %p78 = por %p76, %p77
    %p79 = scmp.ne.s32.totalorder %s70, %s71
    %p80 = scmp.eq.s32.totalorder %s18, 0
    %p81 = por %p79, %p80
    %p82 = scmp.ne.s32.totalorder %s70, %s71
    %p83 = scmp.eq.s32.totalorder %s19, 3
    %p84 = por %p82, %p83
    %p86 = scmp.ne.s32.totalorder %s71, %s85
    %p87 = scmp.eq.s32.totalorder %s19, 0
    %p88 = por %p86, %p87
    %s90 = sadd.s32 %s89, 1
    %p93 = scmp.eq.s32.totalorder %s13, 3
    %p94 = scmp.ne.s32.totalorder %s89, %s91
    %p95 = scmp.eq.s32.totalorder %s13, 0
    %p96 = por %p94, %p95
    %p97 = scmp.ne.s32.totalorder %s89, %s91
    %p98 = scmp.eq.s32.totalorder %s18, 3
    %p99 = por %p97, %p98
    %p100 = scmp.ne.s32.totalorder %s91, %s92
    %p101 = scmp.eq.s32.totalorder %s18, 0
    %p102 = por %p100, %p101
    %p103 = scmp.ne.s32.totalorder %s91, %s92
    %p104 = scmp.eq.s32.totalorder %s19, 3
    %p105 = por %p103, %p104
    %p107 = scmp.ne.s32.totalorder %s92, %s106
    %p108 = scmp.eq.s32.totalorder %s19, 0
    %p109 = por %p107, %p108
    %s111 = sadd.s32 %s110, 1
    %p114 = scmp.eq.s32.totalorder %s13, 3
    %p115 = scmp.ne.s32.totalorder %s110, %s112
    %p116 = scmp.eq.s32.totalorder %s13, 0
    %p117 = por %p115, %p116
    %p118 = scmp.ne.s32.totalorder %s110, %s112
    %p119 = scmp.eq.s32.totalorder %s18, 3
    %p120 = por %p118, %p119
    %p121 = scmp.ne.s32.totalorder %s112, %s113
    %p122 = scmp.eq.s32.totalorder %s18, 0
    %p123 = por %p121, %p122
    %p124 = scmp.ne.s32.totalorder %s112, %s113
    %p125 = scmp.eq.s32.totalorder %s19, 3
    %p126 = por %p124, %p125
    %p128 = scmp.ne.s32.totalorder %s113, %s127
    %p129 = scmp.eq.s32.totalorder %s19, 0
    %p130 = por %p128, %p129
    %s132 = sadd.s32 %s131, 1
    %p135 = scmp.eq.s32.totalorder %s13, 3
    %p136 = scmp.ne.s32.totalorder %s131, %s133
    %p137 = scmp.eq.s32.totalorder %s13, 0
    %p138 = por %p136, %p137
    %p139 = scmp.ne.s32.totalorder %s131, %s133
    %p140 = scmp.eq.s32.totalorder %s18, 3
    %p141 = por %p139, %p140
    %p142 = scmp.ne.s32.totalorder %s133, %s134
    %p143 = scmp.eq.s32.totalorder %s18, 0
    %p144 = por %p142, %p143
    %p145 = scmp.ne.s32.totalorder %s133, %s134
    %p146 = scmp.eq.s32.totalorder %s19, 3
    %p147 = por %p145, %p146
    %p149 = scmp.ne.s32.totalorder %s134, %s148
    %p150 = scmp.eq.s32.totalorder %s19, 0
    %p151 = por %p149, %p150
    %s153 = sadd.s32 %s152, 1
    %p156 = scmp.eq.s32.totalorder %s13, 3
    %p157 = scmp.ne.s32.totalorder %s152, %s154
    %p158 = scmp.eq.s32.totalorder %s13, 0
    %p159 = por %p157, %p158
    %p160 = scmp.ne.s32.totalorder %s152, %s154
    %p161 = scmp.eq.s32.totalorder %s18, 3
    %p162 = por %p160, %p161
    %p163 = scmp.ne.s32.totalorder %s154, %s155
    %p164 = scmp.eq.s32.totalorder %s18, 0
    %p165 = por %p163, %p164
    %p166 = scmp.ne.s32.totalorder %s154, %s155
    %p167 = scmp.eq.s32.totalorder %s19, 3
    %p168 = por %p166, %p167
    %p170 = scmp.ne.s32.totalorder %s155, %s169
    %p171 = scmp.eq.s32.totalorder %s19, 0
    %p172 = por %p170, %p171
    %s173 = ssub.s32 %s13, %s20
    %p174 = scmp.eq.s32.totalorder %s173, 0
    %s176 = sadd.s32 %s175, 1
    %s177 = scalar_select %p174, %s175, %s176
    %p180 = pneg %p174
    %p181 = scmp.eq.s32.totalorder %s13, 3
    %p182 = por %p180, %p181
    %p183 = scmp.ne.s32.totalorder %s175, %s178
    %p184 = scmp.eq.s32.totalorder %s13, 0
    %p185 = por %p183, %p184
    %p186 = scmp.ne.s32.totalorder %s175, %s178
    %p187 = scmp.eq.s32.totalorder %s18, 3
    %p188 = por %p186, %p187
    %p189 = scmp.ne.s32.totalorder %s178, %s179
    %p190 = scmp.eq.s32.totalorder %s18, 0
    %p191 = por %p189, %p190
    %p192 = scmp.ne.s32.totalorder %s178, %s179
    %p193 = scmp.eq.s32.totalorder %s19, 3
    %p194 = por %p192, %p193
    %p196 = scmp.ne.s32.totalorder %s179, %s195
    %p197 = scmp.eq.s32.totalorder %s19, 0
    %p198 = por %p196, %p197
    %p199 = scmp.le.s32.totalorder 1, %s13
    %p200 = scmp.lt.s32.totalorder %s13, 5
    %p201 = pnand %p199, %p200
    %p202 = pneg %p201
    // Predicated region
    $region9: #{tpu_custom_call.1} parent=5 // pred_check
      _
    $region10: #{tpu_custom_call.1} parent=5 // pred_check_branch
      %204 = sbr.rel (%p201) target = $region12
    $region11: #{tpu_custom_call.1} parent=5 // pred_region
      %s205 = ssub.s32 %s13, 1
      // Predicated region
      $region13: #{tpu_custom_call.1} parent=11 // pred_check
        %p206 = pneg %p60
      $region14: #{tpu_custom_call.1} parent=11 // pred_check_branch
        %208 = sbr.rel (%p206) target = $region16
      $region15: #{tpu_custom_call.1} parent=11 // pred_region
        _
      $region16: #{tpu_custom_call.1} parent=11 // pred_fallthru
        _
      // Predicated region
      $region17: #{tpu_custom_call.1} parent=11 // pred_check
        %p209 = pneg %p81
      $region18: #{tpu_custom_call.1} parent=11 // pred_check_branch
        %211 = sbr.rel (%p209) target = $region20
      $region19: #{tpu_custom_call.1} parent=11 // pred_region
        _
      $region20: #{tpu_custom_call.1} parent=11 // pred_fallthru
        _
      // Predicated region
      $region21: #{tpu_custom_call.1} parent=11 // pred_check
        %p212 = pneg %p102
      $region22: #{tpu_custom_call.1} parent=11 // pred_check_branch
        %214 = sbr.rel (%p212) target = $region24
      $region23: #{tpu_custom_call.1} parent=11 // pred_region
        _
      $region24: #{tpu_custom_call.1} parent=11 // pred_fallthru
        _
      // Predicated region
      $region25: #{tpu_custom_call.1} parent=11 // pred_check
        %p215 = pneg %p123
      $region26: #{tpu_custom_call.1} parent=11 // pred_check_branch
        %217 = sbr.rel (%p215) target = $region28
      $region27: #{tpu_custom_call.1} parent=11 // pred_region
        _
      $region28: #{tpu_custom_call.1} parent=11 // pred_fallthru
        _
      // Predicated region
      $region29: #{tpu_custom_call.1} parent=11 // pred_check
        %p218 = pneg %p144
      $region30: #{tpu_custom_call.1} parent=11 // pred_check_branch
        %220 = sbr.rel (%p218) target = $region32
      $region31: #{tpu_custom_call.1} parent=11 // pred_region
        _
      $region32: #{tpu_custom_call.1} parent=11 // pred_fallthru
        _
      // Predicated region
      $region33: #{tpu_custom_call.1} parent=11 // pred_check
        %p221 = pneg %p165
      $region34: #{tpu_custom_call.1} parent=11 // pred_check_branch
        %223 = sbr.rel (%p221) target = $region36
      $region35: #{tpu_custom_call.1} parent=11 // pred_region
        _
      $region36: #{tpu_custom_call.1} parent=11 // pred_fallthru
        _
    $region12: #{tpu_custom_call.1} parent=5 // pred_fallthru
      _
    %p224 = scmp.lt.s32.totalorder %s13, 4
    // Predicated region
    $region37: #{tpu_custom_call.1} parent=5 // pred_check
      %p225 = pneg %p224
    $region38: #{tpu_custom_call.1} parent=5 // pred_check_branch
      %227 = sbr.rel (%p225) target = $region40
    $region39: #{tpu_custom_call.1} parent=5 // pred_region
      // Predicated region
      $region41: #{tpu_custom_call.1} parent=39 // pred_check
        %p228 = pneg %p33
      $region42: #{tpu_custom_call.1} parent=39 // pred_check_branch
        %230 = sbr.rel (%p228) target = $region44
      $region43: #{tpu_custom_call.1} parent=39 // pred_region
        %s231 = smul.u32 32, %s13
        %p232 = scmp.lt.s32.totalorder %s231, 127
        %s233 = scalar_select %p232, %s231, 127
        %s234 = smul.addr %s233, 8
        %s235 = scalar_lea.vmem %s0, %s234
        %s236 = smul.u32 32, %s13
      $region44: #{tpu_custom_call.1} parent=39 // pred_fallthru
        _
    $region40: #{tpu_custom_call.1} parent=5 // pred_fallthru
      _
    %p237 = scmp.le.s32.totalorder 1, %s13
    %p238 = scmp.lt.s32.totalorder %s13, 5
    %p239 = pnand %p237, %p238
    %p240 = pneg %p239
    // Predicated region
    $region45: #{tpu_custom_call.1} parent=5 // pred_check
      _
    $region46: #{tpu_custom_call.1} parent=5 // pred_check_branch
      %242 = sbr.rel (%p239) target = $region48
    $region47: #{tpu_custom_call.1} parent=5 // pred_region
      %s243 = ssub.s32 %s13, 1
      %s244 = smul.u32 32, %s18
      %p245 = scmp.lt.s32.totalorder %s244, 127
      %s246 = scalar_select %p245, %s244, 127
      %s247 = smul.addr %s246, 8
      %s248 = scalar_lea.vmem %s0, %s247
      %p249 = pneg %p39
      %p250 = pneg %p36
      %p251 = pneg %p60
      %p252 = pneg %p57
      %p253 = pneg %p81
      %p254 = pneg %p78
      %p255 = pneg %p102
      %p256 = pneg %p99
      %p257 = pneg %p123
      %p258 = pneg %p120
      %p259 = pneg %p144
      %p260 = pneg %p141
      %p261 = pneg %p165
      %p262 = pneg %p162
      %p263 = pneg %p191
      %p264 = pneg %p188
      %s265 = smul.u32 32, %s18
      %p266 = scmp.lt.s32.totalorder %s265, 127
      %s267 = scalar_select %p266, %s265, 127
      %s268 = smul.addr %s267, 8
      %s269 = scalar_lea.vmem %s7, %s268
      %s270 = smul.u32 32, %s18
      %p271 = scmp.lt.s32.totalorder %s270, 127
      %s272 = scalar_select %p271, %s270, 127
      %s273 = smul.addr %s272, 8
      %s274 = scalar_lea.vmem %s0, %s273
      %s275 = smul.u32 32, %s18
      %s276 = smul.u32 32, %s18
      %p277 = scmp.lt.s32.totalorder %s276, 127
      %s278 = scalar_select %p277, %s276, 127
      %s279 = smul.addr %s278, 8
      %s280 = scalar_lea.vmem %s7, %s279
      %s281 = smul.u32 32, %s18
      %v283 = vld [vmem:[%s274] sm:$0xff]
      %v284 = vld [vmem:[%s274 + $0x8] sm:$0xff]
      %v285 = vld [vmem:[%s274 + $0x10] sm:$0xff]
      %v286 = vld [vmem:[%s274 + $0x18] sm:$0xff]
      %v287 = vld [vmem:[%s274 + $0x20] sm:$0xff]
      %v288 = vld [vmem:[%s274 + $0x28] sm:$0xff]
      %v289 = vld [vmem:[%s274 + $0x30] sm:$0xff]
      %v290 = vld [vmem:[%s274 + $0x38] sm:$0xff]
      %v291 = vld [vmem:[%s274 + $0x40] sm:$0xff]
      %v292 = vld [vmem:[%s274 + $0x48] sm:$0xff]
      %v293 = vld [vmem:[%s274 + $0x50] sm:$0xff]
      %v294 = vld [vmem:[%s274 + $0x58] sm:$0xff]
      %v295 = vld [vmem:[%s274 + $0x60] sm:$0xff]
      %v296 = vld [vmem:[%s274 + $0x68] sm:$0xff]
      %v297 = vld [vmem:[%s274 + $0x70] sm:$0xff]
      %v298 = vld [vmem:[%s274 + $0x78] sm:$0xff]
      %v299 = vld [vmem:[%s274 + $0x80] sm:$0xff]
      %v300 = vld [vmem:[%s274 + $0x88] sm:$0xff]
      %v301 = vld [vmem:[%s274 + $0x90] sm:$0xff]
      %v302 = vld [vmem:[%s274 + $0x98] sm:$0xff]
      %v303 = vld [vmem:[%s274 + $0xa0] sm:$0xff]
      %v304 = vld [vmem:[%s274 + $0xa8] sm:$0xff]
      %v305 = vld [vmem:[%s274 + $0xb0] sm:$0xff]
      %v306 = vld [vmem:[%s274 + $0xb8] sm:$0xff]
      %v307 = vld [vmem:[%s274 + $0xc0] sm:$0xff]
      %v308 = vld [vmem:[%s274 + $0xc8] sm:$0xff]
      %v309 = vld [vmem:[%s274 + $0xd0] sm:$0xff]
      %v310 = vld [vmem:[%s274 + $0xd8] sm:$0xff]
      %v311 = vld [vmem:[%s274 + $0xe0] sm:$0xff]
      %v312 = vld [vmem:[%s274 + $0xe8] sm:$0xff]
      %v313 = vld [vmem:[%s274 + $0xf0] sm:$0xff]
      %v314 = vld [vmem:[%s274 + $0xf8] sm:$0xff]
      %v315 = vld [vmem:[%s1] sm:$0xf]
      %v316 = vld [vmem:[%s1 + $0x4] sm:$0xf]
      %v317 = vld [vmem:[%s1 + $0x8] sm:$0xf]
      %v318 = vld [vmem:[%s1 + $0xc] sm:$0xf]
      %v319 = vld [vmem:[%s2] sm:$0x1]
      %v320 = vpack.c.bf16 %v284, %v283
      %v321 = vpack.c.bf16 %v286, %v285
      %v322 = vpack.c.bf16 %v288, %v287
      %v323 = vpack.c.bf16 %v290, %v289
      %v324 = vpack.c.bf16 %v292, %v291
      %v325 = vpack.c.bf16 %v294, %v293
      %v326 = vpack.c.bf16 %v296, %v295
      %v327 = vpack.c.bf16 %v298, %v297
      %v328 = vpack.c.bf16 %v300, %v299
      %v329 = vpack.c.bf16 %v302, %v301
      %v330 = vpack.c.bf16 %v304, %v303
      %v331 = vpack.c.bf16 %v306, %v305
      %v332 = vpack.c.bf16 %v308, %v307
      %v333 = vpack.c.bf16 %v310, %v309
      %v334 = vpack.c.bf16 %v312, %v311
      %v335 = vpack.c.bf16 %v314, %v313
      %v337 = vlaneseq
      %v338 = vshrl.u32 %v337, 7
      %v339 = vsub.s32 0, %v338
      %v340 = vrot.slane %v319, %v339
      %v346 = vunpack.c.l.b16 %v315
      %v347 = vunpack.c.l.b16 %v316
      %v348 = vunpack.c.l.b16 %v317
      %v349 = vunpack.c.l.b16 %v318
      %v350 = vpack.c.b16 %v347, %v346
      %v351 = vpack.c.b16 %v349, %v348
      %vm354 = vcmask 261120
      %v356 = vsel %vm354, %v320, 0
      %v359 = vsel %vm354, %v321, 0
      %v362 = vsel %vm354, %v322, 0
      %v365 = vsel %vm354, %v323, 0
      %v368 = vsel %vm354, %v324, 0
      %v371 = vsel %vm354, %v325, 0
      %v374 = vsel %vm354, %v326, 0
      %v377 = vsel %vm354, %v327, 0
      %v380 = vsel %vm354, %v328, 0
      %v383 = vsel %vm354, %v329, 0
      %v386 = vsel %vm354, %v330, 0
      %v389 = vsel %vm354, %v331, 0
      %v392 = vsel %vm354, %v332, 0
      %v395 = vsel %vm354, %v333, 0
      %v398 = vsel %vm354, %v334, 0
      %v401 = vsel %vm354, %v335, 0
      %403 = vmatprep.subr.bf16.mxu0 0
      %404 = vmatpush1.bf16.msra.mxu0 %v350
      %405 = vmatprep.subr.bf16.mxu0 0
      %406 = vmatpush1.bf16.msra.mxu0 %v351
      %407 = vmatprep.subr.bf16.mxu0 0
      %408 = vmatpush1.bf16.msra.mxu0 0
      %409 = vmatprep.subr.bf16.mxu0 0
      %410 = vmatpush1.bf16.msra.mxu0 0
      %411 = vmatprep.subr.bf16.mxu0 0
      %412 = vmatpush1.bf16.msra.mxu0 0
      %413 = vmatprep.subr.bf16.mxu0 0
      %414 = vmatpush1.bf16.msra.mxu0 0
      %415 = vmatprep.subr.bf16.mxu0 0
      %416 = vmatpush1.bf16.msra.mxu0 0
      %417 = vmatprep.subr.bf16.mxu0 0
      %418 = vmatpush1.bf16.msra.mxu0 0
      %419 = vmatprep.subr.bf16.mxu0 0
      %420 = vmatpush1.bf16.msra.mxu0 0
      %421 = vmatprep.subr.bf16.mxu0 0
      %422 = vmatpush1.bf16.msra.mxu0 0
      %423 = vmatprep.subr.bf16.mxu0 0
      %424 = vmatpush1.bf16.msra.mxu0 0
      %425 = vmatprep.subr.bf16.mxu0 0
      %426 = vmatpush1.bf16.msra.mxu0 0
      %427 = vmatprep.subr.bf16.mxu0 0
      %428 = vmatpush1.bf16.msra.mxu0 0
      %429 = vmatprep.subr.bf16.mxu0 0
      %430 = vmatpush1.bf16.msra.mxu0 0
      %431 = vmatprep.subr.bf16.mxu0 0
      %432 = vmatpush1.bf16.msra.mxu0 0
      %433 = vmatprep.subr.bf16.mxu0 0
      %434 = vmatpush1.bf16.msra.mxu0 0
      %435 = vmatprep.mubr.bf16.mxu0 0
      %436 = vmatmul.mubr.bf16.gmra.mrb[0].mxu0 %v356
      %v437 = vpop.f32.mrb[0].mxu0
      %v438 = vadd.f32 %v340, %v437
      %v439 = vpop.f32.mrb[0].mxu0
      %v440 = vpop.f32.mrb[0].mxu0
      %v441 = vadd.f32 %v340, %v440
      %v442 = vpop.f32.mrb[0].mxu0
      %443 = vmatprep.mubr.bf16.mxu0 0
      %444 = vmatmul.mubr.bf16.gmra.mrb[0].mxu0 %v359
      %v445 = vpop.f32.mrb[0].mxu0
      %v446 = vadd.f32 %v340, %v445
      %v447 = vpop.f32.mrb[0].mxu0
      %v448 = vpop.f32.mrb[0].mxu0
      %v449 = vadd.f32 %v340, %v448
      %v450 = vpop.f32.mrb[0].mxu0
      %451 = vmatprep.mubr.bf16.mxu0 0
      %452 = vmatmul.mubr.bf16.gmra.mrb[0].mxu0 %v362
      %v453 = vpop.f32.mrb[0].mxu0
      %v454 = vadd.f32 %v340, %v453
      %v455 = vpop.f32.mrb[0].mxu0
      %v456 = vpop.f32.mrb[0].mxu0
      %v457 = vadd.f32 %v340, %v456
      %v458 = vpop.f32.mrb[0].mxu0
      %459 = vmatprep.mubr.bf16.mxu0 0
      %460 = vmatmul.mubr.bf16.gmra.mrb[0].mxu0 %v365
      %v461 = vpop.f32.mrb[0].mxu0
      %v462 = vadd.f32 %v340, %v461
      %v463 = vpop.f32.mrb[0].mxu0
      %v464 = vpop.f32.mrb[0].mxu0
      %v465 = vadd.f32 %v340, %v464
      %v466 = vpop.f32.mrb[0].mxu0
      %467 = vmatprep.mubr.bf16.mxu0 0
      %468 = vmatmul.mubr.bf16.gmra.mrb[0].mxu0 %v368
      %v469 = vpop.f32.mrb[0].mxu0
      %v470 = vadd.f32 %v340, %v469
      %v471 = vpop.f32.mrb[0].mxu0
      %v472 = vpop.f32.mrb[0].mxu0
      %v473 = vadd.f32 %v340, %v472
      %v474 = vpop.f32.mrb[0].mxu0
      %475 = vmatprep.mubr.bf16.mxu0 0
      %476 = vmatmul.mubr.bf16.gmra.mrb[0].mxu0 %v371
      %v477 = vpop.f32.mrb[0].mxu0
      %v478 = vadd.f32 %v340, %v477
      %v479 = vpop.f32.mrb[0].mxu0
      %v480 = vpop.f32.mrb[0].mxu0
      %v481 = vadd.f32 %v340, %v480
      %v482 = vpop.f32.mrb[0].mxu0
      %483 = vmatprep.mubr.bf16.mxu0 0
      %484 = vmatmul.mubr.bf16.gmra.mrb[0].mxu0 %v374
      %v485 = vpop.f32.mrb[0].mxu0
      %v486 = vadd.f32 %v340, %v485
      %v487 = vpop.f32.mrb[0].mxu0
      %v488 = vpop.f32.mrb[0].mxu0
      %v489 = vadd.f32 %v340, %v488
      %v490 = vpop.f32.mrb[0].mxu0
      %491 = vmatprep.mubr.bf16.mxu0 0
      %492 = vmatmul.mubr.bf16.gmra.mrb[0].mxu0 %v377
      %v493 = vpop.f32.mrb[0].mxu0
      %v494 = vadd.f32 %v340, %v493
      %v495 = vpop.f32.mrb[0].mxu0
      %v496 = vpop.f32.mrb[0].mxu0
      %v497 = vadd.f32 %v340, %v496
      %v498 = vpop.f32.mrb[0].mxu0
      %499 = vmatprep.mubr.bf16.mxu0 0
      %500 = vmatmul.mubr.bf16.gmra.mrb[0].mxu0 %v380
      %v501 = vpop.f32.mrb[0].mxu0
      %v502 = vadd.f32 %v340, %v501
      %v503 = vpop.f32.mrb[0].mxu0
      %v504 = vpop.f32.mrb[0].mxu0
      %v505 = vadd.f32 %v340, %v504
      %v506 = vpop.f32.mrb[0].mxu0
      %507 = vmatprep.mubr.bf16.mxu0 0
      %508 = vmatmul.mubr.bf16.gmra.mrb[0].mxu0 %v383
      %v509 = vpop.f32.mrb[0].mxu0
      %v510 = vadd.f32 %v340, %v509
      %v511 = vpop.f32.mrb[0].mxu0
      %v512 = vpop.f32.mrb[0].mxu0
      %v513 = vadd.f32 %v340, %v512
      %v514 = vpop.f32.mrb[0].mxu0
      %515 = vmatprep.mubr.bf16.mxu0 0
      %516 = vmatmul.mubr.bf16.gmra.mrb[0].mxu0 %v386
      %v517 = vpop.f32.mrb[0].mxu0
      %v518 = vadd.f32 %v340, %v517
      %v519 = vpop.f32.mrb[0].mxu0
      %v520 = vpop.f32.mrb[0].mxu0
      %v521 = vadd.f32 %v340, %v520
      %v522 = vpop.f32.mrb[0].mxu0
      %523 = vmatprep.mubr.bf16.mxu0 0
      %524 = vmatmul.mubr.bf16.gmra.mrb[0].mxu0 %v389
      %v525 = vpop.f32.mrb[0].mxu0
      %v526 = vadd.f32 %v340, %v525
      %v527 = vpop.f32.mrb[0].mxu0
      %v528 = vpop.f32.mrb[0].mxu0
      %v529 = vadd.f32 %v340, %v528
      %v530 = vpop.f32.mrb[0].mxu0
      %531 = vmatprep.mubr.bf16.mxu0 0
      %532 = vmatmul.mubr.bf16.gmra.mrb[0].mxu0 %v392
      %v533 = vpop.f32.mrb[0].mxu0
      %v534 = vadd.f32 %v340, %v533
      %v535 = vpop.f32.mrb[0].mxu0
      %v536 = vpop.f32.mrb[0].mxu0
      %v537 = vadd.f32 %v340, %v536
      %v538 = vpop.f32.mrb[0].mxu0
      %539 = vmatprep.mubr.bf16.mxu0 0
      %540 = vmatmul.mubr.bf16.gmra.mrb[0].mxu0 %v395
      %v541 = vpop.f32.mrb[0].mxu0
      %v542 = vadd.f32 %v340, %v541
      %v543 = vpop.f32.mrb[0].mxu0
      %v544 = vpop.f32.mrb[0].mxu0
      %v545 = vadd.f32 %v340, %v544
      %v546 = vpop.f32.mrb[0].mxu0
      %547 = vmatprep.mubr.bf16.mxu0 0
      %548 = vmatmul.mubr.bf16.gmra.mrb[0].mxu0 %v398
      %v549 = vpop.f32.mrb[0].mxu0
      %v550 = vadd.f32 %v340, %v549
      %v551 = vpop.f32.mrb[0].mxu0
      %v552 = vpop.f32.mrb[0].mxu0
      %v553 = vadd.f32 %v340, %v552
      %v554 = vpop.f32.mrb[0].mxu0
      %555 = vmatprep.mubr.bf16.mxu0 0
      %556 = vmatmul.mubr.bf16.gmra.mrb[0].mxu0 %v401
      %v557 = vpop.f32.mrb[0].mxu0
      %v558 = vadd.f32 %v340, %v557
      %v559 = vpop.f32.mrb[0].mxu0
      %v560 = vpop.f32.mrb[0].mxu0
      %v561 = vadd.f32 %v340, %v560
      %v562 = vpop.f32.mrb[0].mxu0
      %563 = vdwg.mxu0
      %vm564 = vcmp.gt.f32.partialorder %v438, 0.0
      %vm565 = vcmp.gt.f32.partialorder %v441, 0.0
      %vm566 = vcmp.gt.f32.partialorder %v446, 0.0
      %vm567 = vcmp.gt.f32.partialorder %v449, 0.0
      %vm568 = vcmp.gt.f32.partialorder %v454, 0.0
      %vm569 = vcmp.gt.f32.partialorder %v457, 0.0
      %vm570 = vcmp.gt.f32.partialorder %v462, 0.0
      %vm571 = vcmp.gt.f32.partialorder %v465, 0.0
      %vm572 = vcmp.gt.f32.partialorder %v470, 0.0
      %vm573 = vcmp.gt.f32.partialorder %v473, 0.0
      %vm574 = vcmp.gt.f32.partialorder %v478, 0.0
      %vm575 = vcmp.gt.f32.partialorder %v481, 0.0
      %vm576 = vcmp.gt.f32.partialorder %v486, 0.0
      %vm577 = vcmp.gt.f32.partialorder %v489, 0.0
      %vm578 = vcmp.gt.f32.partialorder %v494, 0.0
      %vm579 = vcmp.gt.f32.partialorder %v497, 0.0
      %vm580 = vcmp.gt.f32.partialorder %v502, 0.0
      %vm581 = vcmp.gt.f32.partialorder %v505, 0.0
      %vm582 = vcmp.gt.f32.partialorder %v510, 0.0
      %vm583 = vcmp.gt.f32.partialorder %v513, 0.0
      %vm584 = vcmp.gt.f32.partialorder %v518, 0.0
      %vm585 = vcmp.gt.f32.partialorder %v521, 0.0
      %vm586 = vcmp.gt.f32.partialorder %v526, 0.0
      %vm587 = vcmp.gt.f32.partialorder %v529, 0.0
      %vm588 = vcmp.gt.f32.partialorder %v534, 0.0
      %vm589 = vcmp.gt.f32.partialorder %v537, 0.0
      %vm590 = vcmp.gt.f32.partialorder %v542, 0.0
      %vm591 = vcmp.gt.f32.partialorder %v545, 0.0
      %vm592 = vcmp.gt.f32.partialorder %v550, 0.0
      %vm593 = vcmp.gt.f32.partialorder %v553, 0.0
      %vm594 = vcmp.gt.f32.partialorder %v558, 0.0
      %vm595 = vcmp.gt.f32.partialorder %v561, 0.0
      %v596 = vmul.f32 %v438, 0.01
      %v597 = vmul.f32 %v441, 0.01
      %v598 = vmul.f32 %v446, 0.01
      %v599 = vmul.f32 %v449, 0.01
      %v600 = vmul.f32 %v454, 0.01
      %v601 = vmul.f32 %v457, 0.01
      %v602 = vmul.f32 %v462, 0.01
      %v603 = vmul.f32 %v465, 0.01
      %v604 = vmul.f32 %v470, 0.01
      %v605 = vmul.f32 %v473, 0.01
      %v606 = vmul.f32 %v478, 0.01
      %v607 = vmul.f32 %v481, 0.01
      %v608 = vmul.f32 %v486, 0.01
      %v609 = vmul.f32 %v489, 0.01
      %v610 = vmul.f32 %v494, 0.01
      %v611 = vmul.f32 %v497, 0.01
      %v612 = vmul.f32 %v502, 0.01
      %v613 = vmul.f32 %v505, 0.01
      %v614 = vmul.f32 %v510, 0.01
      %v615 = vmul.f32 %v513, 0.01
      %v616 = vmul.f32 %v518, 0.01
      %v617 = vmul.f32 %v521, 0.01
      %v618 = vmul.f32 %v526, 0.01
      %v619 = vmul.f32 %v529, 0.01
      %v620 = vmul.f32 %v534, 0.01
      %v621 = vmul.f32 %v537, 0.01
      %v622 = vmul.f32 %v542, 0.01
      %v623 = vmul.f32 %v545, 0.01
      %v624 = vmul.f32 %v550, 0.01
      %v625 = vmul.f32 %v553, 0.01
      %v626 = vmul.f32 %v558, 0.01
      %v627 = vmul.f32 %v561, 0.01
      %v628 = vsel %vm564, %v438, %v596
      %v629 = vsel %vm565, %v441, %v597
      %v630 = vsel %vm566, %v446, %v598
      %v631 = vsel %vm567, %v449, %v599
      %v632 = vsel %vm568, %v454, %v600
      %v633 = vsel %vm569, %v457, %v601
      %v634 = vsel %vm570, %v462, %v602
      %v635 = vsel %vm571, %v465, %v603
      %v636 = vsel %vm572, %v470, %v604
      %v637 = vsel %vm573, %v473, %v605
      %v638 = vsel %vm574, %v478, %v606
      %v639 = vsel %vm575, %v481, %v607
      %v640 = vsel %vm576, %v486, %v608
      %v641 = vsel %vm577, %v489, %v609
      %v642 = vsel %vm578, %v494, %v610
      %v643 = vsel %vm579, %v497, %v611
      %v644 = vsel %vm580, %v502, %v612
      %v645 = vsel %vm581, %v505, %v613
      %v646 = vsel %vm582, %v510, %v614
      %v647 = vsel %vm583, %v513, %v615
      %v648 = vsel %vm584, %v518, %v616
      %v649 = vsel %vm585, %v521, %v617
      %v650 = vsel %vm586, %v526, %v618
      %v651 = vsel %vm587, %v529, %v619
      %v652 = vsel %vm588, %v534, %v620
      %v653 = vsel %vm589, %v537, %v621
      %v654 = vsel %vm590, %v542, %v622
      %v655 = vsel %vm591, %v545, %v623
      %v656 = vsel %vm592, %v550, %v624
      %v657 = vsel %vm593, %v553, %v625
      %v658 = vsel %vm594, %v558, %v626
      %v659 = vsel %vm595, %v561, %v627
      %v660 = vld [vmem:[%s3] sm:$0xf]
      %v661 = vld [vmem:[%s3 + $0x4] sm:$0xf]
      %v662 = vld [vmem:[%s3 + $0x8] sm:$0xf]
      %v663 = vld [vmem:[%s3 + $0xc] sm:$0xf]
      %v664 = vld [vmem:[%s3 + $0x10] sm:$0xf]
      %v665 = vld [vmem:[%s3 + $0x14] sm:$0xf]
      %v666 = vld [vmem:[%s3 + $0x18] sm:$0xf]
      %v667 = vld [vmem:[%s3 + $0x1c] sm:$0xf]
      %v668 = vld [vmem:[%s4] sm:$0x1]
      %v669 = vpack.c.bf16 %v629, %v628
      %v670 = vpack.c.bf16 %v631, %v630
      %v671 = vpack.c.bf16 %v633, %v632
      %v672 = vpack.c.bf16 %v635, %v634
      %v673 = vpack.c.bf16 %v637, %v636
      %v674 = vpack.c.bf16 %v639, %v638
      %v675 = vpack.c.bf16 %v641, %v640
      %v676 = vpack.c.bf16 %v643, %v642
      %v677 = vpack.c.bf16 %v645, %v644
      %v678 = vpack.c.bf16 %v647, %v646
      %v679 = vpack.c.bf16 %v649, %v648
      %v680 = vpack.c.bf16 %v651, %v650
      %v681 = vpack.c.bf16 %v653, %v652
      %v682 = vpack.c.bf16 %v655, %v654
      %v683 = vpack.c.bf16 %v657, %v656
      %v684 = vpack.c.bf16 %v659, %v658
      %v686 = vlaneseq
      %v687 = vshrl.u32 %v686, 7
      %v688 = vsub.s32 0, %v687
      %v689 = vrot.slane %v668, %v688
      %v699 = vunpack.c.l.b16 %v660
      %v700 = vunpack.c.l.b16 %v661
      %v701 = vunpack.c.l.b16 %v662
      %v702 = vunpack.c.l.b16 %v663
      %v703 = vunpack.c.l.b16 %v664
      %v704 = vunpack.c.l.b16 %v665
      %v705 = vunpack.c.l.b16 %v666
      %v706 = vunpack.c.l.b16 %v667
      %v707 = vpack.c.b16 %v700, %v699
      %v708 = vpack.c.b16 %v702, %v701
      %v709 = vpack.c.b16 %v704, %v703
      %v710 = vpack.c.b16 %v706, %v705
      %vm715 = vcmask 523264
      %v717 = vsel %vm715, %v669, 0
      %v720 = vsel %vm715, %v670, 0
      %v723 = vsel %vm715, %v671, 0
      %v726 = vsel %vm715, %v672, 0
      %v729 = vsel %vm715, %v673, 0
      %v732 = vsel %vm715, %v674, 0
      %v735 = vsel %vm715, %v675, 0
      %v738 = vsel %vm715, %v676, 0
      %v741 = vsel %vm715, %v677, 0
      %v744 = vsel %vm715, %v678, 0
      %v747 = vsel %vm715, %v679, 0
      %v750 = vsel %vm715, %v680, 0
      %v753 = vsel %vm715, %v681, 0
      %v756 = vsel %vm715, %v682, 0
      %v759 = vsel %vm715, %v683, 0
      %v762 = vsel %vm715, %v684, 0
      %764 = vmatprep.subr.bf16.mxu0 0
      %765 = vmatpush1.bf16.msra.mxu0 %v707
      %766 = vmatprep.subr.bf16.mxu0 0
      %767 = vmatpush1.bf16.msra.mxu0 %v708
      %768 = vmatprep.subr.bf16.mxu0 0
      %769 = vmatpush1.bf16.msra.mxu0 %v709
      %770 = vmatprep.subr.bf16.mxu0 0
      %771 = vmatpush1.bf16.msra.mxu0 %v710
      %772 = vmatprep.subr.bf16.mxu0 0
      %773 = vmatpush1.bf16.msra.mxu0 0
      %774 = vmatprep.subr.bf16.mxu0 0
      %775 = vmatpush1.bf16.msra.mxu0 0
      %776 = vmatprep.subr.bf16.mxu0 0
      %777 = vmatpush1.bf16.msra.mxu0 0
      %778 = vmatprep.subr.bf16.mxu0 0
      %779 = vmatpush1.bf16.msra.mxu0 0
      %780 = vmatprep.subr.bf16.mxu0 0
      %781 = vmatpush1.bf16.msra.mxu0 0
      %782 = vmatprep.subr.bf16.mxu0 0
      %783 = vmatpush1.bf16.msra.mxu0 0
      %784 = vmatprep.subr.bf16.mxu0 0
      %785 = vmatpush1.bf16.msra.mxu0 0
      %786 = vmatprep.subr.bf16.mxu0 0
      %787 = vmatpush1.bf16.msra.mxu0 0
      %788 = vmatprep.subr.bf16.mxu0 0
      %789 = vmatpush1.bf16.msra.mxu0 0
      %790 = vmatprep.subr.bf16.mxu0 0
      %791 = vmatpush1.bf16.msra.mxu0 0
      %792 = vmatprep.subr.bf16.mxu0 0
      %793 = vmatpush1.bf16.msra.mxu0 0
      %794 = vmatprep.subr.bf16.mxu0 0
      %795 = vmatpush1.bf16.msra.mxu0 0
      %796 = vmatprep.mubr.bf16.mxu0 0
      %797 = vmatmul.mubr.bf16.gmra.mrb[0].mxu0 %v717
      %v798 = vpop.f32.mrb[0].mxu0
      %v799 = vadd.f32 %v689, %v798
      %v800 = vpop.f32.mrb[0].mxu0
      %v801 = vpop.f32.mrb[0].mxu0
      %v802 = vadd.f32 %v689, %v801
      %v803 = vpop.f32.mrb[0].mxu0
      %804 = vmatprep.mubr.bf16.mxu0 0
      %805 = vmatmul.mubr.bf16.gmra.mrb[0].mxu0 %v720
      %v806 = vpop.f32.mrb[0].mxu0
      %v807 = vadd.f32 %v689, %v806
      %v808 = vpop.f32.mrb[0].mxu0
      %v809 = vpop.f32.mrb[0].mxu0
      %v810 = vadd.f32 %v689, %v809
      %v811 = vpop.f32.mrb[0].mxu0
      %812 = vmatprep.mubr.bf16.mxu0 0
      %813 = vmatmul.mubr.bf16.gmra.mrb[0].mxu0 %v723
      %v814 = vpop.f32.mrb[0].mxu0
      %v815 = vadd.f32 %v689, %v814
      %v816 = vpop.f32.mrb[0].mxu0
      %v817 = vpop.f32.mrb[0].mxu0
      %v818 = vadd.f32 %v689, %v817
      %v819 = vpop.f32.mrb[0].mxu0
      %820 = vmatprep.mubr.bf16.mxu0 0
      %821 = vmatmul.mubr.bf16.gmra.mrb[0].mxu0 %v726
      %v822 = vpop.f32.mrb[0].mxu0
      %v823 = vadd.f32 %v689, %v822
      %v824 = vpop.f32.mrb[0].mxu0
      %v825 = vpop.f32.mrb[0].mxu0
      %v826 = vadd.f32 %v689, %v825
      %v827 = vpop.f32.mrb[0].mxu0
      %828 = vmatprep.mubr.bf16.mxu0 0
      %829 = vmatmul.mubr.bf16.gmra.mrb[0].mxu0 %v729
      %v830 = vpop.f32.mrb[0].mxu0
      %v831 = vadd.f32 %v689, %v830
      %v832 = vpop.f32.mrb[0].mxu0
      %v833 = vpop.f32.mrb[0].mxu0
      %v834 = vadd.f32 %v689, %v833
      %v835 = vpop.f32.mrb[0].mxu0
      %836 = vmatprep.mubr.bf16.mxu0 0
      %837 = vmatmul.mubr.bf16.gmra.mrb[0].mxu0 %v732
      %v838 = vpop.f32.mrb[0].mxu0
      %v839 = vadd.f32 %v689, %v838
      %v840 = vpop.f32.mrb[0].mxu0
      %v841 = vpop.f32.mrb[0].mxu0
      %v842 = vadd.f32 %v689, %v841
      %v843 = vpop.f32.mrb[0].mxu0
      %844 = vmatprep.mubr.bf16.mxu0 0
      %845 = vmatmul.mubr.bf16.gmra.mrb[0].mxu0 %v735
      %v846 = vpop.f32.mrb[0].mxu0
      %v847 = vadd.f32 %v689, %v846
      %v848 = vpop.f32.mrb[0].mxu0
      %v849 = vpop.f32.mrb[0].mxu0
      %v850 = vadd.f32 %v689, %v849
      %v851 = vpop.f32.mrb[0].mxu0
      %852 = vmatprep.mubr.bf16.mxu0 0
      %853 = vmatmul.mubr.bf16.gmra.mrb[0].mxu0 %v738
      %v854 = vpop.f32.mrb[0].mxu0
      %v855 = vadd.f32 %v689, %v854
      %v856 = vpop.f32.mrb[0].mxu0
      %v857 = vpop.f32.mrb[0].mxu0
      %v858 = vadd.f32 %v689, %v857
      %v859 = vpop.f32.mrb[0].mxu0
      %860 = vmatprep.mubr.bf16.mxu0 0
      %861 = vmatmul.mubr.bf16.gmra.mrb[0].mxu0 %v741
      %v862 = vpop.f32.mrb[0].mxu0
      %v863 = vadd.f32 %v689, %v862
      %v864 = vpop.f32.mrb[0].mxu0
      %v865 = vpop.f32.mrb[0].mxu0
      %v866 = vadd.f32 %v689, %v865
      %v867 = vpop.f32.mrb[0].mxu0
      %868 = vmatprep.mubr.bf16.mxu0 0
      %869 = vmatmul.mubr.bf16.gmra.mrb[0].mxu0 %v744
      %v870 = vpop.f32.mrb[0].mxu0
      %v871 = vadd.f32 %v689, %v870
      %v872 = vpop.f32.mrb[0].mxu0
      %v873 = vpop.f32.mrb[0].mxu0
      %v874 = vadd.f32 %v689, %v873
      %v875 = vpop.f32.mrb[0].mxu0
      %876 = vmatprep.mubr.bf16.mxu0 0
      %877 = vmatmul.mubr.bf16.gmra.mrb[0].mxu0 %v747
      %v878 = vpop.f32.mrb[0].mxu0
      %v879 = vadd.f32 %v689, %v878
      %v880 = vpop.f32.mrb[0].mxu0
      %v881 = vpop.f32.mrb[0].mxu0
      %v882 = vadd.f32 %v689, %v881
      %v883 = vpop.f32.mrb[0].mxu0
      %884 = vmatprep.mubr.bf16.mxu0 0
      %885 = vmatmul.mubr.bf16.gmra.mrb[0].mxu0 %v750
      %v886 = vpop.f32.mrb[0].mxu0
      %v887 = vadd.f32 %v689, %v886
      %v888 = vpop.f32.mrb[0].mxu0
      %v889 = vpop.f32.mrb[0].mxu0
      %v890 = vadd.f32 %v689, %v889
      %v891 = vpop.f32.mrb[0].mxu0
      %892 = vmatprep.mubr.bf16.mxu0 0
      %893 = vmatmul.mubr.bf16.gmra.mrb[0].mxu0 %v753
      %v894 = vpop.f32.mrb[0].mxu0
      %v895 = vadd.f32 %v689, %v894
      %v896 = vpop.f32.mrb[0].mxu0
      %v897 = vpop.f32.mrb[0].mxu0
      %v898 = vadd.f32 %v689, %v897
      %v899 = vpop.f32.mrb[0].mxu0
      %900 = vmatprep.mubr.bf16.mxu0 0
      %901 = vmatmul.mubr.bf16.gmra.mrb[0].mxu0 %v756
      %v902 = vpop.f32.mrb[0].mxu0
      %v903 = vadd.f32 %v689, %v902
      %v904 = vpop.f32.mrb[0].mxu0
      %v905 = vpop.f32.mrb[0].mxu0
      %v906 = vadd.f32 %v689, %v905
      %v907 = vpop.f32.mrb[0].mxu0
      %908 = vmatprep.mubr.bf16.mxu0 0
      %909 = vmatmul.mubr.bf16.gmra.mrb[0].mxu0 %v759
      %v910 = vpop.f32.mrb[0].mxu0
      %v911 = vadd.f32 %v689, %v910
      %v912 = vpop.f32.mrb[0].mxu0
      %v913 = vpop.f32.mrb[0].mxu0
      %v914 = vadd.f32 %v689, %v913
      %v915 = vpop.f32.mrb[0].mxu0
      %916 = vmatprep.mubr.bf16.mxu0 0
      %917 = vmatmul.mubr.bf16.gmra.mrb[0].mxu0 %v762
      %v918 = vpop.f32.mrb[0].mxu0
      %v919 = vadd.f32 %v689, %v918
      %v920 = vpop.f32.mrb[0].mxu0
      %v921 = vpop.f32.mrb[0].mxu0
      %v922 = vadd.f32 %v689, %v921
      %v923 = vpop.f32.mrb[0].mxu0
      %924 = vdwg.mxu0
      %vm925 = vcmp.gt.f32.partialorder %v799, 0.0
      %vm926 = vcmp.gt.f32.partialorder %v802, 0.0
      %vm927 = vcmp.gt.f32.partialorder %v807, 0.0
      %vm928 = vcmp.gt.f32.partialorder %v810, 0.0
      %vm929 = vcmp.gt.f32.partialorder %v815, 0.0
      %vm930 = vcmp.gt.f32.partialorder %v818, 0.0
      %vm931 = vcmp.gt.f32.partialorder %v823, 0.0
      %vm932 = vcmp.gt.f32.partialorder %v826, 0.0
      %vm933 = vcmp.gt.f32.partialorder %v831, 0.0
      %vm934 = vcmp.gt.f32.partialorder %v834, 0.0
      %vm935 = vcmp.gt.f32.partialorder %v839, 0.0
      %vm936 = vcmp.gt.f32.partialorder %v842, 0.0
      %vm937 = vcmp.gt.f32.partialorder %v847, 0.0
      %vm938 = vcmp.gt.f32.partialorder %v850, 0.0
      %vm939 = vcmp.gt.f32.partialorder %v855, 0.0
      %vm940 = vcmp.gt.f32.partialorder %v858, 0.0
      %vm941 = vcmp.gt.f32.partialorder %v863, 0.0
      %vm942 = vcmp.gt.f32.partialorder %v866, 0.0
      %vm943 = vcmp.gt.f32.partialorder %v871, 0.0
      %vm944 = vcmp.gt.f32.partialorder %v874, 0.0
      %vm945 = vcmp.gt.f32.partialorder %v879, 0.0
      %vm946 = vcmp.gt.f32.partialorder %v882, 0.0
      %vm947 = vcmp.gt.f32.partialorder %v887, 0.0
      %vm948 = vcmp.gt.f32.partialorder %v890, 0.0
      %vm949 = vcmp.gt.f32.partialorder %v895, 0.0
      %vm950 = vcmp.gt.f32.partialorder %v898, 0.0
      %vm951 = vcmp.gt.f32.partialorder %v903, 0.0
      %vm952 = vcmp.gt.f32.partialorder %v906, 0.0
      %vm953 = vcmp.gt.f32.partialorder %v911, 0.0
      %vm954 = vcmp.gt.f32.partialorder %v914, 0.0
      %vm955 = vcmp.gt.f32.partialorder %v919, 0.0
      %vm956 = vcmp.gt.f32.partialorder %v922, 0.0
      %v957 = vmul.f32 %v799, 0.01
      %v958 = vmul.f32 %v802, 0.01
      %v959 = vmul.f32 %v807, 0.01
      %v960 = vmul.f32 %v810, 0.01
      %v961 = vmul.f32 %v815, 0.01
      %v962 = vmul.f32 %v818, 0.01
      %v963 = vmul.f32 %v823, 0.01
      %v964 = vmul.f32 %v826, 0.01
      %v965 = vmul.f32 %v831, 0.01
      %v966 = vmul.f32 %v834, 0.01
      %v967 = vmul.f32 %v839, 0.01
      %v968 = vmul.f32 %v842, 0.01
      %v969 = vmul.f32 %v847, 0.01
      %v970 = vmul.f32 %v850, 0.01
      %v971 = vmul.f32 %v855, 0.01
      %v972 = vmul.f32 %v858, 0.01
      %v973 = vmul.f32 %v863, 0.01
      %v974 = vmul.f32 %v866, 0.01
      %v975 = vmul.f32 %v871, 0.01
      %v976 = vmul.f32 %v874, 0.01
      %v977 = vmul.f32 %v879, 0.01
      %v978 = vmul.f32 %v882, 0.01
      %v979 = vmul.f32 %v887, 0.01
      %v980 = vmul.f32 %v890, 0.01
      %v981 = vmul.f32 %v895, 0.01
      %v982 = vmul.f32 %v898, 0.01
      %v983 = vmul.f32 %v903, 0.01
      %v984 = vmul.f32 %v906, 0.01
      %v985 = vmul.f32 %v911, 0.01
      %v986 = vmul.f32 %v914, 0.01
      %v987 = vmul.f32 %v919, 0.01
      %v988 = vmul.f32 %v922, 0.01
      %v989 = vsel %vm925, %v799, %v957
      %v990 = vsel %vm926, %v802, %v958
      %v991 = vsel %vm927, %v807, %v959
      %v992 = vsel %vm928, %v810, %v960
      %v993 = vsel %vm929, %v815, %v961
      %v994 = vsel %vm930, %v818, %v962
      %v995 = vsel %vm931, %v823, %v963
      %v996 = vsel %vm932, %v826, %v964
      %v997 = vsel %vm933, %v831, %v965
      %v998 = vsel %vm934, %v834, %v966
      %v999 = vsel %vm935, %v839, %v967
      %v1000 = vsel %vm936, %v842, %v968
      %v1001 = vsel %vm937, %v847, %v969
      %v1002 = vsel %vm938, %v850, %v970
      %v1003 = vsel %vm939, %v855, %v971
      %v1004 = vsel %vm940, %v858, %v972
      %v1005 = vsel %vm941, %v863, %v973
      %v1006 = vsel %vm942, %v866, %v974
      %v1007 = vsel %vm943, %v871, %v975
      %v1008 = vsel %vm944, %v874, %v976
      %v1009 = vsel %vm945, %v879, %v977
      %v1010 = vsel %vm946, %v882, %v978
      %v1011 = vsel %vm947, %v887, %v979
      %v1012 = vsel %vm948, %v890, %v980
      %v1013 = vsel %vm949, %v895, %v981
      %v1014 = vsel %vm950, %v898, %v982
      %v1015 = vsel %vm951, %v903, %v983
      %v1016 = vsel %vm952, %v906, %v984
      %v1017 = vsel %vm953, %v911, %v985
      %v1018 = vsel %vm954, %v914, %v986
      %v1019 = vsel %vm955, %v919, %v987
      %v1020 = vsel %vm956, %v922, %v988
      %s1021 = scalar_lea.vmem %s3, 32
      %v1022 = vld [vmem:[%s1021] sm:$0xf]
      %v1023 = vld [vmem:[%s1021 + $0x4] sm:$0xf]
      %v1024 = vld [vmem:[%s1021 + $0x8] sm:$0xf]
      %v1025 = vld [vmem:[%s1021 + $0xc] sm:$0xf]
      %v1026 = vld [vmem:[%s1021 + $0x10] sm:$0xf]
      %v1027 = vld [vmem:[%s1021 + $0x14] sm:$0xf]
      %v1028 = vld [vmem:[%s1021 + $0x18] sm:$0xf]
      %v1029 = vld [vmem:[%s1021 + $0x1c] sm:$0xf]
      %s1030 = scalar_lea.vmem %s4, 1
      %v1031 = vld [vmem:[%s1030] sm:$0x1]
      %v1032 = vpack.c.bf16 %v990, %v989
      %v1033 = vpack.c.bf16 %v992, %v991
      %v1034 = vpack.c.bf16 %v994, %v993
      %v1035 = vpack.c.bf16 %v996, %v995
      %v1036 = vpack.c.bf16 %v998, %v997
      %v1037 = vpack.c.bf16 %v1000, %v999
      %v1038 = vpack.c.bf16 %v1002, %v1001
      %v1039 = vpack.c.bf16 %v1004, %v1003
      %v1040 = vpack.c.bf16 %v1006, %v1005
      %v1041 = vpack.c.bf16 %v1008, %v1007
      %v1042 = vpack.c.bf16 %v1010, %v1009
      %v1043 = vpack.c.bf16 %v1012, %v1011
      %v1044 = vpack.c.bf16 %v1014, %v1013
      %v1045 = vpack.c.bf16 %v1016, %v1015
      %v1046 = vpack.c.bf16 %v1018, %v1017
      %v1047 = vpack.c.bf16 %v1020, %v1019
      %v1049 = vlaneseq
      %v1050 = vshrl.u32 %v1049, 7
      %v1051 = vsub.s32 0, %v1050
      %v1052 = vrot.slane %v1031, %v1051
      %v1062 = vunpack.c.l.b16 %v1022
      %v1063 = vunpack.c.l.b16 %v1023
      %v1064 = vunpack.c.l.b16 %v1024
      %v1065 = vunpack.c.l.b16 %v1025
      %v1066 = vunpack.c.l.b16 %v1026
      %v1067 = vunpack.c.l.b16 %v1027
      %v1068 = vunpack.c.l.b16 %v1028
      %v1069 = vunpack.c.l.b16 %v1029
      %v1070 = vpack.c.b16 %v1063, %v1062
      %v1071 = vpack.c.b16 %v1065, %v1064
      %v1072 = vpack.c.b16 %v1067, %v1066
      %v1073 = vpack.c.b16 %v1069, %v1068
      %v1079 = vsel %vm715, %v1032, 0
      %v1082 = vsel %vm715, %v1033, 0
      %v1085 = vsel %vm715, %v1034, 0
      %v1088 = vsel %vm715, %v1035, 0
      %v1091 = vsel %vm715, %v1036, 0
      %v1094 = vsel %vm715, %v1037, 0
      %v1097 = vsel %vm715, %v1038, 0
      %v1100 = vsel %vm715, %v1039, 0
      %v1103 = vsel %vm715, %v1040, 0
      %v1106 = vsel %vm715, %v1041, 0
      %v1109 = vsel %vm715, %v1042, 0
      %v1112 = vsel %vm715, %v1043, 0
      %v1115 = vsel %vm715, %v1044, 0
      %v1118 = vsel %vm715, %v1045, 0
      %v1121 = vsel %vm715, %v1046, 0
      %v1124 = vsel %vm715, %v1047, 0
      %1126 = vmatprep.subr.bf16.mxu0 0
      %1127 = vmatpush1.bf16.msra.mxu0 %v1070
      %1128 = vmatprep.subr.bf16.mxu0 0
      %1129 = vmatpush1.bf16.msra.mxu0 %v1071
      %1130 = vmatprep.subr.bf16.mxu0 0
      %1131 = vmatpush1.bf16.msra.mxu0 %v1072
      %1132 = vmatprep.subr.bf16.mxu0 0
      %1133 = vmatpush1.bf16.msra.mxu0 %v1073
      %1134 = vmatprep.subr.bf16.mxu0 0
      %1135 = vmatpush1.bf16.msra.mxu0 0
      %1136 = vmatprep.subr.bf16.mxu0 0
      %1137 = vmatpush1.bf16.msra.mxu0 0
      %1138 = vmatprep.subr.bf16.mxu0 0
      %1139 = vmatpush1.bf16.msra.mxu0 0
      %1140 = vmatprep.subr.bf16.mxu0 0
      %1141 = vmatpush1.bf16.msra.mxu0 0
      %1142 = vmatprep.subr.bf16.mxu0 0
      %1143 = vmatpush1.bf16.msra.mxu0 0
      %1144 = vmatprep.subr.bf16.mxu0 0
      %1145 = vmatpush1.bf16.msra.mxu0 0
      %1146 = vmatprep.subr.bf16.mxu0 0
      %1147 = vmatpush1.bf16.msra.mxu0 0
      %1148 = vmatprep.subr.bf16.mxu0 0
      %1149 = vmatpush1.bf16.msra.mxu0 0
      %1150 = vmatprep.subr.bf16.mxu0 0
      %1151 = vmatpush1.bf16.msra.mxu0 0
      %1152 = vmatprep.subr.bf16.mxu0 0
      %1153 = vmatpush1.bf16.msra.mxu0 0
      %1154 = vmatprep.subr.bf16.mxu0 0
      %1155 = vmatpush1.bf16.msra.mxu0 0
      %1156 = vmatprep.subr.bf16.mxu0 0
      %1157 = vmatpush1.bf16.msra.mxu0 0
      %1158 = vmatprep.mubr.bf16.mxu0 0
      %1159 = vmatmul.mubr.bf16.gmra.mrb[0].mxu0 %v1079
      %v1160 = vpop.f32.mrb[0].mxu0
      %v1161 = vadd.f32 %v1052, %v1160
      %v1162 = vpop.f32.mrb[0].mxu0
      %v1163 = vpop.f32.mrb[0].mxu0
      %v1164 = vadd.f32 %v1052, %v1163
      %v1165 = vpop.f32.mrb[0].mxu0
      %1166 = vmatprep.mubr.bf16.mxu0 0
      %1167 = vmatmul.mubr.bf16.gmra.mrb[0].mxu0 %v1082
      %v1168 = vpop.f32.mrb[0].mxu0
      %v1169 = vadd.f32 %v1052, %v1168
      %v1170 = vpop.f32.mrb[0].mxu0
      %v1171 = vpop.f32.mrb[0].mxu0
      %v1172 = vadd.f32 %v1052, %v1171
      %v1173 = vpop.f32.mrb[0].mxu0
      %1174 = vmatprep.mubr.bf16.mxu0 0
      %1175 = vmatmul.mubr.bf16.gmra.mrb[0].mxu0 %v1085
      %v1176 = vpop.f32.mrb[0].mxu0
      %v1177 = vadd.f32 %v1052, %v1176
      %v1178 = vpop.f32.mrb[0].mxu0
      %v1179 = vpop.f32.mrb[0].mxu0
      %v1180 = vadd.f32 %v1052, %v1179
      %v1181 = vpop.f32.mrb[0].mxu0
      %1182 = vmatprep.mubr.bf16.mxu0 0
      %1183 = vmatmul.mubr.bf16.gmra.mrb[0].mxu0 %v1088
      %v1184 = vpop.f32.mrb[0].mxu0
      %v1185 = vadd.f32 %v1052, %v1184
      %v1186 = vpop.f32.mrb[0].mxu0
      %v1187 = vpop.f32.mrb[0].mxu0
      %v1188 = vadd.f32 %v1052, %v1187
      %v1189 = vpop.f32.mrb[0].mxu0
      %1190 = vmatprep.mubr.bf16.mxu0 0
      %1191 = vmatmul.mubr.bf16.gmra.mrb[0].mxu0 %v1091
      %v1192 = vpop.f32.mrb[0].mxu0
      %v1193 = vadd.f32 %v1052, %v1192
      %v1194 = vpop.f32.mrb[0].mxu0
      %v1195 = vpop.f32.mrb[0].mxu0
      %v1196 = vadd.f32 %v1052, %v1195
      %v1197 = vpop.f32.mrb[0].mxu0
      %1198 = vmatprep.mubr.bf16.mxu0 0
      %1199 = vmatmul.mubr.bf16.gmra.mrb[0].mxu0 %v1094
      %v1200 = vpop.f32.mrb[0].mxu0
      %v1201 = vadd.f32 %v1052, %v1200
      %v1202 = vpop.f32.mrb[0].mxu0
      %v1203 = vpop.f32.mrb[0].mxu0
      %v1204 = vadd.f32 %v1052, %v1203
      %v1205 = vpop.f32.mrb[0].mxu0
      %1206 = vmatprep.mubr.bf16.mxu0 0
      %1207 = vmatmul.mubr.bf16.gmra.mrb[0].mxu0 %v1097
      %v1208 = vpop.f32.mrb[0].mxu0
      %v1209 = vadd.f32 %v1052, %v1208
      %v1210 = vpop.f32.mrb[0].mxu0
      %v1211 = vpop.f32.mrb[0].mxu0
      %v1212 = vadd.f32 %v1052, %v1211
      %v1213 = vpop.f32.mrb[0].mxu0
      %1214 = vmatprep.mubr.bf16.mxu0 0
      %1215 = vmatmul.mubr.bf16.gmra.mrb[0].mxu0 %v1100
      %v1216 = vpop.f32.mrb[0].mxu0
      %v1217 = vadd.f32 %v1052, %v1216
      %v1218 = vpop.f32.mrb[0].mxu0
      %v1219 = vpop.f32.mrb[0].mxu0
      %v1220 = vadd.f32 %v1052, %v1219
      %v1221 = vpop.f32.mrb[0].mxu0
      %1222 = vmatprep.mubr.bf16.mxu0 0
      %1223 = vmatmul.mubr.bf16.gmra.mrb[0].mxu0 %v1103
      %v1224 = vpop.f32.mrb[0].mxu0
      %v1225 = vadd.f32 %v1052, %v1224
      %v1226 = vpop.f32.mrb[0].mxu0
      %v1227 = vpop.f32.mrb[0].mxu0
      %v1228 = vadd.f32 %v1052, %v1227
      %v1229 = vpop.f32.mrb[0].mxu0
      %1230 = vmatprep.mubr.bf16.mxu0 0
      %1231 = vmatmul.mubr.bf16.gmra.mrb[0].mxu0 %v1106
      %v1232 = vpop.f32.mrb[0].mxu0
      %v1233 = vadd.f32 %v1052, %v1232
      %v1234 = vpop.f32.mrb[0].mxu0
      %v1235 = vpop.f32.mrb[0].mxu0
      %v1236 = vadd.f32 %v1052, %v1235
      %v1237 = vpop.f32.mrb[0].mxu0
      %1238 = vmatprep.mubr.bf16.mxu0 0
      %1239 = vmatmul.mubr.bf16.gmra.mrb[0].mxu0 %v1109
      %v1240 = vpop.f32.mrb[0].mxu0
      %v1241 = vadd.f32 %v1052, %v1240
      %v1242 = vpop.f32.mrb[0].mxu0
      %v1243 = vpop.f32.mrb[0].mxu0
      %v1244 = vadd.f32 %v1052, %v1243
      %v1245 = vpop.f32.mrb[0].mxu0
      %1246 = vmatprep.mubr.bf16.mxu0 0
      %1247 = vmatmul.mubr.bf16.gmra.mrb[0].mxu0 %v1112
      %v1248 = vpop.f32.mrb[0].mxu0
      %v1249 = vadd.f32 %v1052, %v1248
      %v1250 = vpop.f32.mrb[0].mxu0
      %v1251 = vpop.f32.mrb[0].mxu0
      %v1252 = vadd.f32 %v1052, %v1251
      %v1253 = vpop.f32.mrb[0].mxu0
      %1254 = vmatprep.mubr.bf16.mxu0 0
      %1255 = vmatmul.mubr.bf16.gmra.mrb[0].mxu0 %v1115
      %v1256 = vpop.f32.mrb[0].mxu0
      %v1257 = vadd.f32 %v1052, %v1256
      %v1258 = vpop.f32.mrb[0].mxu0
      %v1259 = vpop.f32.mrb[0].mxu0
      %v1260 = vadd.f32 %v1052, %v1259
      %v1261 = vpop.f32.mrb[0].mxu0
      %1262 = vmatprep.mubr.bf16.mxu0 0
      %1263 = vmatmul.mubr.bf16.gmra.mrb[0].mxu0 %v1118
      %v1264 = vpop.f32.mrb[0].mxu0
      %v1265 = vadd.f32 %v1052, %v1264
      %v1266 = vpop.f32.mrb[0].mxu0
      %v1267 = vpop.f32.mrb[0].mxu0
      %v1268 = vadd.f32 %v1052, %v1267
      %v1269 = vpop.f32.mrb[0].mxu0
      %1270 = vmatprep.mubr.bf16.mxu0 0
      %1271 = vmatmul.mubr.bf16.gmra.mrb[0].mxu0 %v1121
      %v1272 = vpop.f32.mrb[0].mxu0
      %v1273 = vadd.f32 %v1052, %v1272
      %v1274 = vpop.f32.mrb[0].mxu0
      %v1275 = vpop.f32.mrb[0].mxu0
      %v1276 = vadd.f32 %v1052, %v1275
      %v1277 = vpop.f32.mrb[0].mxu0
      %1278 = vmatprep.mubr.bf16.mxu0 0
      %1279 = vmatmul.mubr.bf16.gmra.mrb[0].mxu0 %v1124
      %v1280 = vpop.f32.mrb[0].mxu0
      %v1281 = vadd.f32 %v1052, %v1280
      %v1282 = vpop.f32.mrb[0].mxu0
      %v1283 = vpop.f32.mrb[0].mxu0
      %v1284 = vadd.f32 %v1052, %v1283
      %v1285 = vpop.f32.mrb[0].mxu0
      %1286 = vdwg.mxu0
      %vm1287 = vcmp.gt.f32.partialorder %v1161, 0.0
      %vm1288 = vcmp.gt.f32.partialorder %v1164, 0.0
      %vm1289 = vcmp.gt.f32.partialorder %v1169, 0.0
      %vm1290 = vcmp.gt.f32.partialorder %v1172, 0.0
      %vm1291 = vcmp.gt.f32.partialorder %v1177, 0.0
      %vm1292 = vcmp.gt.f32.partialorder %v1180, 0.0
      %vm1293 = vcmp.gt.f32.partialorder %v1185, 0.0
      %vm1294 = vcmp.gt.f32.partialorder %v1188, 0.0
      %vm1295 = vcmp.gt.f32.partialorder %v1193, 0.0
      %vm1296 = vcmp.gt.f32.partialorder %v1196, 0.0
      %vm1297 = vcmp.gt.f32.partialorder %v1201, 0.0
      %vm1298 = vcmp.gt.f32.partialorder %v1204, 0.0
      %vm1299 = vcmp.gt.f32.partialorder %v1209, 0.0
      %vm1300 = vcmp.gt.f32.partialorder %v1212, 0.0
      %vm1301 = vcmp.gt.f32.partialorder %v1217, 0.0
      %vm1302 = vcmp.gt.f32.partialorder %v1220, 0.0
      %vm1303 = vcmp.gt.f32.partialorder %v1225, 0.0
      %vm1304 = vcmp.gt.f32.partialorder %v1228, 0.0
      %vm1305 = vcmp.gt.f32.partialorder %v1233, 0.0
      %vm1306 = vcmp.gt.f32.partialorder %v1236, 0.0
      %vm1307 = vcmp.gt.f32.partialorder %v1241, 0.0
      %vm1308 = vcmp.gt.f32.partialorder %v1244, 0.0
      %vm1309 = vcmp.gt.f32.partialorder %v1249, 0.0
      %vm1310 = vcmp.gt.f32.partialorder %v1252, 0.0
      %vm1311 = vcmp.gt.f32.partialorder %v1257, 0.0
      %vm1312 = vcmp.gt.f32.partialorder %v1260, 0.0
      %vm1313 = vcmp.gt.f32.partialorder %v1265, 0.0
      %vm1314 = vcmp.gt.f32.partialorder %v1268, 0.0
      %vm1315 = vcmp.gt.f32.partialorder %v1273, 0.0
      %vm1316 = vcmp.gt.f32.partialorder %v1276, 0.0
      %vm1317 = vcmp.gt.f32.partialorder %v1281, 0.0
      %vm1318 = vcmp.gt.f32.partialorder %v1284, 0.0
      %v1319 = vmul.f32 %v1161, 0.01
      %v1320 = vmul.f32 %v1164, 0.01
      %v1321 = vmul.f32 %v1169, 0.01
      %v1322 = vmul.f32 %v1172, 0.01
      %v1323 = vmul.f32 %v1177, 0.01
      %v1324 = vmul.f32 %v1180, 0.01
      %v1325 = vmul.f32 %v1185, 0.01
      %v1326 = vmul.f32 %v1188, 0.01
      %v1327 = vmul.f32 %v1193, 0.01
      %v1328 = vmul.f32 %v1196, 0.01
      %v1329 = vmul.f32 %v1201, 0.01
      %v1330 = vmul.f32 %v1204, 0.01
      %v1331 = vmul.f32 %v1209, 0.01
      %v1332 = vmul.f32 %v1212, 0.01
      %v1333 = vmul.f32 %v1217, 0.01
      %v1334 = vmul.f32 %v1220, 0.01
      %v1335 = vmul.f32 %v1225, 0.01
      %v1336 = vmul.f32 %v1228, 0.01
      %v1337 = vmul.f32 %v1233, 0.01
      %v1338 = vmul.f32 %v1236, 0.01
      %v1339 = vmul.f32 %v1241, 0.01
      %v1340 = vmul.f32 %v1244, 0.01
      %v1341 = vmul.f32 %v1249, 0.01
      %v1342 = vmul.f32 %v1252, 0.01
      %v1343 = vmul.f32 %v1257, 0.01
      %v1344 = vmul.f32 %v1260, 0.01
      %v1345 = vmul.f32 %v1265, 0.01
      %v1346 = vmul.f32 %v1268, 0.01
      %v1347 = vmul.f32 %v1273, 0.01
      %v1348 = vmul.f32 %v1276, 0.01
      %v1349 = vmul.f32 %v1281, 0.01
      %v1350 = vmul.f32 %v1284, 0.01
      %v1351 = vsel %vm1287, %v1161, %v1319
      %v1352 = vsel %vm1288, %v1164, %v1320
      %v1353 = vsel %vm1289, %v1169, %v1321
      %v1354 = vsel %vm1290, %v1172, %v1322
      %v1355 = vsel %vm1291, %v1177, %v1323
      %v1356 = vsel %vm1292, %v1180, %v1324
      %v1357 = vsel %vm1293, %v1185, %v1325
      %v1358 = vsel %vm1294, %v1188, %v1326
      %v1359 = vsel %vm1295, %v1193, %v1327
      %v1360 = vsel %vm1296, %v1196, %v1328
      %v1361 = vsel %vm1297, %v1201, %v1329
      %v1362 = vsel %vm1298, %v1204, %v1330
      %v1363 = vsel %vm1299, %v1209, %v1331
      %v1364 = vsel %vm1300, %v1212, %v1332
      %v1365 = vsel %vm1301, %v1217, %v1333
      %v1366 = vsel %vm1302, %v1220, %v1334
      %v1367 = vsel %vm1303, %v1225, %v1335
      %v1368 = vsel %vm1304, %v1228, %v1336
      %v1369 = vsel %vm1305, %v1233, %v1337
      %v1370 = vsel %vm1306, %v1236, %v1338
      %v1371 = vsel %vm1307, %v1241, %v1339
      %v1372 = vsel %vm1308, %v1244, %v1340
      %v1373 = vsel %vm1309, %v1249, %v1341
      %v1374 = vsel %vm1310, %v1252, %v1342
      %v1375 = vsel %vm1311, %v1257, %v1343
      %v1376 = vsel %vm1312, %v1260, %v1344
      %v1377 = vsel %vm1313, %v1265, %v1345
      %v1378 = vsel %vm1314, %v1268, %v1346
      %v1379 = vsel %vm1315, %v1273, %v1347
      %v1380 = vsel %vm1316, %v1276, %v1348
      %v1381 = vsel %vm1317, %v1281, %v1349
      %v1382 = vsel %vm1318, %v1284, %v1350
      %s1383 = scalar_lea.vmem %s3, 64
      %v1384 = vld [vmem:[%s1383] sm:$0xf]
      %v1385 = vld [vmem:[%s1383 + $0x4] sm:$0xf]
      %v1386 = vld [vmem:[%s1383 + $0x8] sm:$0xf]
      %v1387 = vld [vmem:[%s1383 + $0xc] sm:$0xf]
      %v1388 = vld [vmem:[%s1383 + $0x10] sm:$0xf]
      %v1389 = vld [vmem:[%s1383 + $0x14] sm:$0xf]
      %v1390 = vld [vmem:[%s1383 + $0x18] sm:$0xf]
      %v1391 = vld [vmem:[%s1383 + $0x1c] sm:$0xf]
      %s1392 = scalar_lea.vmem %s4, 2
      %v1393 = vld [vmem:[%s1392] sm:$0x1]
      %v1394 = vpack.c.bf16 %v1352, %v1351
      %v1395 = vpack.c.bf16 %v1354, %v1353
      %v1396 = vpack.c.bf16 %v1356, %v1355
      %v1397 = vpack.c.bf16 %v1358, %v1357
      %v1398 = vpack.c.bf16 %v1360, %v1359
      %v1399 = vpack.c.bf16 %v1362, %v1361
      %v1400 = vpack.c.bf16 %v1364, %v1363
      %v1401 = vpack.c.bf16 %v1366, %v1365
      %v1402 = vpack.c.bf16 %v1368, %v1367
      %v1403 = vpack.c.bf16 %v1370, %v1369
      %v1404 = vpack.c.bf16 %v1372, %v1371
      %v1405 = vpack.c.bf16 %v1374, %v1373
      %v1406 = vpack.c.bf16 %v1376, %v1375
      %v1407 = vpack.c.bf16 %v1378, %v1377
      %v1408 = vpack.c.bf16 %v1380, %v1379
      %v1409 = vpack.c.bf16 %v1382, %v1381
      %v1411 = vlaneseq
      %v1412 = vshrl.u32 %v1411, 7
      %v1413 = vsub.s32 0, %v1412
      %v1414 = vrot.slane %v1393, %v1413
      %v1424 = vunpack.c.l.b16 %v1384
      %v1425 = vunpack.c.l.b16 %v1385
      %v1426 = vunpack.c.l.b16 %v1386
      %v1427 = vunpack.c.l.b16 %v1387
      %v1428 = vunpack.c.l.b16 %v1388
      %v1429 = vunpack.c.l.b16 %v1389
      %v1430 = vunpack.c.l.b16 %v1390
      %v1431 = vunpack.c.l.b16 %v1391
      %v1432 = vpack.c.b16 %v1425, %v1424
      %v1433 = vpack.c.b16 %v1427, %v1426
      %v1434 = vpack.c.b16 %v1429, %v1428
      %v1435 = vpack.c.b16 %v1431, %v1430
      %v1441 = vsel %vm715, %v1394, 0
      %v1444 = vsel %vm715, %v1395, 0
      %v1447 = vsel %vm715, %v1396, 0
      %v1450 = vsel %vm715, %v1397, 0
      %v1453 = vsel %vm715, %v1398, 0
      %v1456 = vsel %vm715, %v1399, 0
      %v1459 = vsel %vm715, %v1400, 0
      %v1462 = vsel %vm715, %v1401, 0
      %v1465 = vsel %vm715, %v1402, 0
      %v1468 = vsel %vm715, %v1403, 0
      %v1471 = vsel %vm715, %v1404, 0
      %v1474 = vsel %vm715, %v1405, 0
      %v1477 = vsel %vm715, %v1406, 0
      %v1480 = vsel %vm715, %v1407, 0
      %v1483 = vsel %vm715, %v1408, 0
      %v1486 = vsel %vm715, %v1409, 0
      %1488 = vmatprep.subr.bf16.mxu0 0
      %1489 = vmatpush1.bf16.msra.mxu0 %v1432
      %1490 = vmatprep.subr.bf16.mxu0 0
      %1491 = vmatpush1.bf16.msra.mxu0 %v1433
      %1492 = vmatprep.subr.bf16.mxu0 0
      %1493 = vmatpush1.bf16.msra.mxu0 %v1434
      %1494 = vmatprep.subr.bf16.mxu0 0
      %1495 = vmatpush1.bf16.msra.mxu0 %v1435
      %1496 = vmatprep.subr.bf16.mxu0 0
      %1497 = vmatpush1.bf16.msra.mxu0 0
      %1498 = vmatprep.subr.bf16.mxu0 0
      %1499 = vmatpush1.bf16.msra.mxu0 0
      %1500 = vmatprep.subr.bf16.mxu0 0
      %1501 = vmatpush1.bf16.msra.mxu0 0
      %1502 = vmatprep.subr.bf16.mxu0 0
      %1503 = vmatpush1.bf16.msra.mxu0 0
      %1504 = vmatprep.subr.bf16.mxu0 0
      %1505 = vmatpush1.bf16.msra.mxu0 0
      %1506 = vmatprep.subr.bf16.mxu0 0
      %1507 = vmatpush1.bf16.msra.mxu0 0
      %1508 = vmatprep.subr.bf16.mxu0 0
      %1509 = vmatpush1.bf16.msra.mxu0 0
      %1510 = vmatprep.subr.bf16.mxu0 0
      %1511 = vmatpush1.bf16.msra.mxu0 0
      %1512 = vmatprep.subr.bf16.mxu0 0
      %1513 = vmatpush1.bf16.msra.mxu0 0
      %1514 = vmatprep.subr.bf16.mxu0 0
      %1515 = vmatpush1.bf16.msra.mxu0 0
      %1516 = vmatprep.subr.bf16.mxu0 0
      %1517 = vmatpush1.bf16.msra.mxu0 0
      %1518 = vmatprep.subr.bf16.mxu0 0
      %1519 = vmatpush1.bf16.msra.mxu0 0
      %1520 = vmatprep.mubr.bf16.mxu0 0
      %1521 = vmatmul.mubr.bf16.gmra.mrb[0].mxu0 %v1441
      %v1522 = vpop.f32.mrb[0].mxu0
      %v1523 = vadd.f32 %v1414, %v1522
      %v1524 = vpop.f32.mrb[0].mxu0
      %v1525 = vpop.f32.mrb[0].mxu0
      %v1526 = vadd.f32 %v1414, %v1525
      %v1527 = vpop.f32.mrb[0].mxu0
      %1528 = vmatprep.mubr.bf16.mxu0 0
      %1529 = vmatmul.mubr.bf16.gmra.mrb[0].mxu0 %v1444
      %v1530 = vpop.f32.mrb[0].mxu0
      %v1531 = vadd.f32 %v1414, %v1530
      %v1532 = vpop.f32.mrb[0].mxu0
      %v1533 = vpop.f32.mrb[0].mxu0
      %v1534 = vadd.f32 %v1414, %v1533
      %v1535 = vpop.f32.mrb[0].mxu0
      %1536 = vmatprep.mubr.bf16.mxu0 0
      %1537 = vmatmul.mubr.bf16.gmra.mrb[0].mxu0 %v1447
      %v1538 = vpop.f32.mrb[0].mxu0
      %v1539 = vadd.f32 %v1414, %v1538
      %v1540 = vpop.f32.mrb[0].mxu0
      %v1541 = vpop.f32.mrb[0].mxu0
      %v1542 = vadd.f32 %v1414, %v1541
      %v1543 = vpop.f32.mrb[0].mxu0
      %1544 = vmatprep.mubr.bf16.mxu0 0
      %1545 = vmatmul.mubr.bf16.gmra.mrb[0].mxu0 %v1450
      %v1546 = vpop.f32.mrb[0].mxu0
      %v1547 = vadd.f32 %v1414, %v1546
      %v1548 = vpop.f32.mrb[0].mxu0
      %v1549 = vpop.f32.mrb[0].mxu0
      %v1550 = vadd.f32 %v1414, %v1549
      %v1551 = vpop.f32.mrb[0].mxu0
      %1552 = vmatprep.mubr.bf16.mxu0 0
      %1553 = vmatmul.mubr.bf16.gmra.mrb[0].mxu0 %v1453
      %v1554 = vpop.f32.mrb[0].mxu0
      %v1555 = vadd.f32 %v1414, %v1554
      %v1556 = vpop.f32.mrb[0].mxu0
      %v1557 = vpop.f32.mrb[0].mxu0
      %v1558 = vadd.f32 %v1414, %v1557
      %v1559 = vpop.f32.mrb[0].mxu0
      %1560 = vmatprep.mubr.bf16.mxu0 0
      %1561 = vmatmul.mubr.bf16.gmra.mrb[0].mxu0 %v1456
      %v1562 = vpop.f32.mrb[0].mxu0
      %v1563 = vadd.f32 %v1414, %v1562
      %v1564 = vpop.f32.mrb[0].mxu0
      %v1565 = vpop.f32.mrb[0].mxu0
      %v1566 = vadd.f32 %v1414, %v1565
      %v1567 = vpop.f32.mrb[0].mxu0
      %1568 = vmatprep.mubr.bf16.mxu0 0
      %1569 = vmatmul.mubr.bf16.gmra.mrb[0].mxu0 %v1459
      %v1570 = vpop.f32.mrb[0].mxu0
      %v1571 = vadd.f32 %v1414, %v1570
      %v1572 = vpop.f32.mrb[0].mxu0
      %v1573 = vpop.f32.mrb[0].mxu0
      %v1574 = vadd.f32 %v1414, %v1573
      %v1575 = vpop.f32.mrb[0].mxu0
      %1576 = vmatprep.mubr.bf16.mxu0 0
      %1577 = vmatmul.mubr.bf16.gmra.mrb[0].mxu0 %v1462
      %v1578 = vpop.f32.mrb[0].mxu0
      %v1579 = vadd.f32 %v1414, %v1578
      %v1580 = vpop.f32.mrb[0].mxu0
      %v1581 = vpop.f32.mrb[0].mxu0
      %v1582 = vadd.f32 %v1414, %v1581
      %v1583 = vpop.f32.mrb[0].mxu0
      %1584 = vmatprep.mubr.bf16.mxu0 0
      %1585 = vmatmul.mubr.bf16.gmra.mrb[0].mxu0 %v1465
      %v1586 = vpop.f32.mrb[0].mxu0
      %v1587 = vadd.f32 %v1414, %v1586
      %v1588 = vpop.f32.mrb[0].mxu0
      %v1589 = vpop.f32.mrb[0].mxu0
      %v1590 = vadd.f32 %v1414, %v1589
      %v1591 = vpop.f32.mrb[0].mxu0
      %1592 = vmatprep.mubr.bf16.mxu0 0
      %1593 = vmatmul.mubr.bf16.gmra.mrb[0].mxu0 %v1468
      %v1594 = vpop.f32.mrb[0].mxu0
      %v1595 = vadd.f32 %v1414, %v1594
      %v1596 = vpop.f32.mrb[0].mxu0
      %v1597 = vpop.f32.mrb[0].mxu0
      %v1598 = vadd.f32 %v1414, %v1597
      %v1599 = vpop.f32.mrb[0].mxu0
      %1600 = vmatprep.mubr.bf16.mxu0 0
      %1601 = vmatmul.mubr.bf16.gmra.mrb[0].mxu0 %v1471
      %v1602 = vpop.f32.mrb[0].mxu0
      %v1603 = vadd.f32 %v1414, %v1602
      %v1604 = vpop.f32.mrb[0].mxu0
      %v1605 = vpop.f32.mrb[0].mxu0
      %v1606 = vadd.f32 %v1414, %v1605
      %v1607 = vpop.f32.mrb[0].mxu0
      %1608 = vmatprep.mubr.bf16.mxu0 0
      %1609 = vmatmul.mubr.bf16.gmra.mrb[0].mxu0 %v1474
      %v1610 = vpop.f32.mrb[0].mxu0
      %v1611 = vadd.f32 %v1414, %v1610
      %v1612 = vpop.f32.mrb[0].mxu0
      %v1613 = vpop.f32.mrb[0].mxu0
      %v1614 = vadd.f32 %v1414, %v1613
      %v1615 = vpop.f32.mrb[0].mxu0
      %1616 = vmatprep.mubr.bf16.mxu0 0
      %1617 = vmatmul.mubr.bf16.gmra.mrb[0].mxu0 %v1477
      %v1618 = vpop.f32.mrb[0].mxu0
      %v1619 = vadd.f32 %v1414, %v1618
      %v1620 = vpop.f32.mrb[0].mxu0
      %v1621 = vpop.f32.mrb[0].mxu0
      %v1622 = vadd.f32 %v1414, %v1621
      %v1623 = vpop.f32.mrb[0].mxu0
      %1624 = vmatprep.mubr.bf16.mxu0 0
      %1625 = vmatmul.mubr.bf16.gmra.mrb[0].mxu0 %v1480
      %v1626 = vpop.f32.mrb[0].mxu0
      %v1627 = vadd.f32 %v1414, %v1626
      %v1628 = vpop.f32.mrb[0].mxu0
      %v1629 = vpop.f32.mrb[0].mxu0
      %v1630 = vadd.f32 %v1414, %v1629
      %v1631 = vpop.f32.mrb[0].mxu0
      %1632 = vmatprep.mubr.bf16.mxu0 0
      %1633 = vmatmul.mubr.bf16.gmra.mrb[0].mxu0 %v1483
      %v1634 = vpop.f32.mrb[0].mxu0
      %v1635 = vadd.f32 %v1414, %v1634
      %v1636 = vpop.f32.mrb[0].mxu0
      %v1637 = vpop.f32.mrb[0].mxu0
      %v1638 = vadd.f32 %v1414, %v1637
      %v1639 = vpop.f32.mrb[0].mxu0
      %1640 = vmatprep.mubr.bf16.mxu0 0
      %1641 = vmatmul.mubr.bf16.gmra.mrb[0].mxu0 %v1486
      %v1642 = vpop.f32.mrb[0].mxu0
      %v1643 = vadd.f32 %v1414, %v1642
      %v1644 = vpop.f32.mrb[0].mxu0
      %v1645 = vpop.f32.mrb[0].mxu0
      %v1646 = vadd.f32 %v1414, %v1645
      %v1647 = vpop.f32.mrb[0].mxu0
      %1648 = vdwg.mxu0
      %vm1649 = vcmp.gt.f32.partialorder %v1523, 0.0
      %vm1650 = vcmp.gt.f32.partialorder %v1526, 0.0
      %vm1651 = vcmp.gt.f32.partialorder %v1531, 0.0
      %vm1652 = vcmp.gt.f32.partialorder %v1534, 0.0
      %vm1653 = vcmp.gt.f32.partialorder %v1539, 0.0
      %vm1654 = vcmp.gt.f32.partialorder %v1542, 0.0
      %vm1655 = vcmp.gt.f32.partialorder %v1547, 0.0
      %vm1656 = vcmp.gt.f32.partialorder %v1550, 0.0
      %vm1657 = vcmp.gt.f32.partialorder %v1555, 0.0
      %vm1658 = vcmp.gt.f32.partialorder %v1558, 0.0
      %vm1659 = vcmp.gt.f32.partialorder %v1563, 0.0
      %vm1660 = vcmp.gt.f32.partialorder %v1566, 0.0
      %vm1661 = vcmp.gt.f32.partialorder %v1571, 0.0
      %vm1662 = vcmp.gt.f32.partialorder %v1574, 0.0
      %vm1663 = vcmp.gt.f32.partialorder %v1579, 0.0
      %vm1664 = vcmp.gt.f32.partialorder %v1582, 0.0
      %vm1665 = vcmp.gt.f32.partialorder %v1587, 0.0
      %vm1666 = vcmp.gt.f32.partialorder %v1590, 0.0
      %vm1667 = vcmp.gt.f32.partialorder %v1595, 0.0
      %vm1668 = vcmp.gt.f32.partialorder %v1598, 0.0
      %vm1669 = vcmp.gt.f32.partialorder %v1603, 0.0
      %vm1670 = vcmp.gt.f32.partialorder %v1606, 0.0
      %vm1671 = vcmp.gt.f32.partialorder %v1611, 0.0
      %vm1672 = vcmp.gt.f32.partialorder %v1614, 0.0
      %vm1673 = vcmp.gt.f32.partialorder %v1619, 0.0
      %vm1674 = vcmp.gt.f32.partialorder %v1622, 0.0
      %vm1675 = vcmp.gt.f32.partialorder %v1627, 0.0
      %vm1676 = vcmp.gt.f32.partialorder %v1630, 0.0
      %vm1677 = vcmp.gt.f32.partialorder %v1635, 0.0
      %vm1678 = vcmp.gt.f32.partialorder %v1638, 0.0
      %vm1679 = vcmp.gt.f32.partialorder %v1643, 0.0
      %vm1680 = vcmp.gt.f32.partialorder %v1646, 0.0
      %v1681 = vmul.f32 %v1523, 0.01
      %v1682 = vmul.f32 %v1526, 0.01
      %v1683 = vmul.f32 %v1531, 0.01
      %v1684 = vmul.f32 %v1534, 0.01
      %v1685 = vmul.f32 %v1539, 0.01
      %v1686 = vmul.f32 %v1542, 0.01
      %v1687 = vmul.f32 %v1547, 0.01
      %v1688 = vmul.f32 %v1550, 0.01
      %v1689 = vmul.f32 %v1555, 0.01
      %v1690 = vmul.f32 %v1558, 0.01
      %v1691 = vmul.f32 %v1563, 0.01
      %v1692 = vmul.f32 %v1566, 0.01
      %v1693 = vmul.f32 %v1571, 0.01
      %v1694 = vmul.f32 %v1574, 0.01
      %v1695 = vmul.f32 %v1579, 0.01
      %v1696 = vmul.f32 %v1582, 0.01
      %v1697 = vmul.f32 %v1587, 0.01
      %v1698 = vmul.f32 %v1590, 0.01
      %v1699 = vmul.f32 %v1595, 0.01
      %v1700 = vmul.f32 %v1598, 0.01
      %v1701 = vmul.f32 %v1603, 0.01
      %v1702 = vmul.f32 %v1606, 0.01
      %v1703 = vmul.f32 %v1611, 0.01
      %v1704 = vmul.f32 %v1614, 0.01
      %v1705 = vmul.f32 %v1619, 0.01
      %v1706 = vmul.f32 %v1622, 0.01
      %v1707 = vmul.f32 %v1627, 0.01
      %v1708 = vmul.f32 %v1630, 0.01
      %v1709 = vmul.f32 %v1635, 0.01
      %v1710 = vmul.f32 %v1638, 0.01
      %v1711 = vmul.f32 %v1643, 0.01
      %v1712 = vmul.f32 %v1646, 0.01
      %v1713 = vsel %vm1649, %v1523, %v1681
      %v1714 = vsel %vm1650, %v1526, %v1682
      %v1715 = vsel %vm1651, %v1531, %v1683
      %v1716 = vsel %vm1652, %v1534, %v1684
      %v1717 = vsel %vm1653, %v1539, %v1685
      %v1718 = vsel %vm1654, %v1542, %v1686
      %v1719 = vsel %vm1655, %v1547, %v1687
      %v1720 = vsel %vm1656, %v1550, %v1688
      %v1721 = vsel %vm1657, %v1555, %v1689
      %v1722 = vsel %vm1658, %v1558, %v1690
      %v1723 = vsel %vm1659, %v1563, %v1691
      %v1724 = vsel %vm1660, %v1566, %v1692
      %v1725 = vsel %vm1661, %v1571, %v1693
      %v1726 = vsel %vm1662, %v1574, %v1694
      %v1727 = vsel %vm1663, %v1579, %v1695
      %v1728 = vsel %vm1664, %v1582, %v1696
      %v1729 = vsel %vm1665, %v1587, %v1697
      %v1730 = vsel %vm1666, %v1590, %v1698
      %v1731 = vsel %vm1667, %v1595, %v1699
      %v1732 = vsel %vm1668, %v1598, %v1700
      %v1733 = vsel %vm1669, %v1603, %v1701
      %v1734 = vsel %vm1670, %v1606, %v1702
      %v1735 = vsel %vm1671, %v1611, %v1703
      %v1736 = vsel %vm1672, %v1614, %v1704
      %v1737 = vsel %vm1673, %v1619, %v1705
      %v1738 = vsel %vm1674, %v1622, %v1706
      %v1739 = vsel %vm1675, %v1627, %v1707
      %v1740 = vsel %vm1676, %v1630, %v1708
      %v1741 = vsel %vm1677, %v1635, %v1709
      %v1742 = vsel %vm1678, %v1638, %v1710
      %v1743 = vsel %vm1679, %v1643, %v1711
      %v1744 = vsel %vm1680, %v1646, %v1712
      %s1745 = scalar_lea.vmem %s3, 96
      %v1746 = vld [vmem:[%s1745] sm:$0xf]
      %v1747 = vld [vmem:[%s1745 + $0x4] sm:$0xf]
      %v1748 = vld [vmem:[%s1745 + $0x8] sm:$0xf]
      %v1749 = vld [vmem:[%s1745 + $0xc] sm:$0xf]
      %v1750 = vld [vmem:[%s1745 + $0x10] sm:$0xf]
      %v1751 = vld [vmem:[%s1745 + $0x14] sm:$0xf]
      %v1752 = vld [vmem:[%s1745 + $0x18] sm:$0xf]
      %v1753 = vld [vmem:[%s1745 + $0x1c] sm:$0xf]
      %s1754 = scalar_lea.vmem %s4, 3
      %v1755 = vld [vmem:[%s1754] sm:$0x1]
      %v1756 = vpack.c.bf16 %v1714, %v1713
      %v1757 = vpack.c.bf16 %v1716, %v1715
      %v1758 = vpack.c.bf16 %v1718, %v1717
      %v1759 = vpack.c.bf16 %v1720, %v1719
      %v1760 = vpack.c.bf16 %v1722, %v1721
      %v1761 = vpack.c.bf16 %v1724, %v1723
      %v1762 = vpack.c.bf16 %v1726, %v1725
      %v1763 = vpack.c.bf16 %v1728, %v1727
      %v1764 = vpack.c.bf16 %v1730, %v1729
      %v1765 = vpack.c.bf16 %v1732, %v1731
      %v1766 = vpack.c.bf16 %v1734, %v1733
      %v1767 = vpack.c.bf16 %v1736, %v1735
      %v1768 = vpack.c.bf16 %v1738, %v1737
      %v1769 = vpack.c.bf16 %v1740, %v1739
      %v1770 = vpack.c.bf16 %v1742, %v1741
      %v1771 = vpack.c.bf16 %v1744, %v1743
      %v1773 = vlaneseq
      %v1774 = vshrl.u32 %v1773, 7
      %v1775 = vsub.s32 0, %v1774
      %v1776 = vrot.slane %v1755, %v1775
      %v1786 = vunpack.c.l.b16 %v1746
      %v1787 = vunpack.c.l.b16 %v1747
      %v1788 = vunpack.c.l.b16 %v1748
      %v1789 = vunpack.c.l.b16 %v1749
      %v1790 = vunpack.c.l.b16 %v1750
      %v1791 = vunpack.c.l.b16 %v1751
      %v1792 = vunpack.c.l.b16 %v1752
      %v1793 = vunpack.c.l.b16 %v1753
      %v1794 = vpack.c.b16 %v1787, %v1786
      %v1795 = vpack.c.b16 %v1789, %v1788
      %v1796 = vpack.c.b16 %v1791, %v1790
      %v1797 = vpack.c.b16 %v1793, %v1792
      %v1803 = vsel %vm715, %v1756, 0
      %v1806 = vsel %vm715, %v1757, 0
      %v1809 = vsel %vm715, %v1758, 0
      %v1812 = vsel %vm715, %v1759, 0
      %v1815 = vsel %vm715, %v1760, 0
      %v1818 = vsel %vm715, %v1761, 0
      %v1821 = vsel %vm715, %v1762, 0
      %v1824 = vsel %vm715, %v1763, 0
      %v1827 = vsel %vm715, %v1764, 0
      %v1830 = vsel %vm715, %v1765, 0
      %v1833 = vsel %vm715, %v1766, 0
      %v1836 = vsel %vm715, %v1767, 0
      %v1839 = vsel %vm715, %v1768, 0
      %v1842 = vsel %vm715, %v1769, 0
      %v1845 = vsel %vm715, %v1770, 0
      %v1848 = vsel %vm715, %v1771, 0
      %1850 = vmatprep.subr.bf16.mxu0 0
      %1851 = vmatpush1.bf16.msra.mxu0 %v1794
      %1852 = vmatprep.subr.bf16.mxu0 0
      %1853 = vmatpush1.bf16.msra.mxu0 %v1795
      %1854 = vmatprep.subr.bf16.mxu0 0
      %1855 = vmatpush1.bf16.msra.mxu0 %v1796
      %1856 = vmatprep.subr.bf16.mxu0 0
      %1857 = vmatpush1.bf16.msra.mxu0 %v1797
      %1858 = vmatprep.subr.bf16.mxu0 0
      %1859 = vmatpush1.bf16.msra.mxu0 0
      %1860 = vmatprep.subr.bf16.mxu0 0
      %1861 = vmatpush1.bf16.msra.mxu0 0
      %1862 = vmatprep.subr.bf16.mxu0 0
      %1863 = vmatpush1.bf16.msra.mxu0 0
      %1864 = vmatprep.subr.bf16.mxu0 0
      %1865 = vmatpush1.bf16.msra.mxu0 0
      %1866 = vmatprep.subr.bf16.mxu0 0
      %1867 = vmatpush1.bf16.msra.mxu0 0
      %1868 = vmatprep.subr.bf16.mxu0 0
      %1869 = vmatpush1.bf16.msra.mxu0 0
      %1870 = vmatprep.subr.bf16.mxu0 0
      %1871 = vmatpush1.bf16.msra.mxu0 0
      %1872 = vmatprep.subr.bf16.mxu0 0
      %1873 = vmatpush1.bf16.msra.mxu0 0
      %1874 = vmatprep.subr.bf16.mxu0 0
      %1875 = vmatpush1.bf16.msra.mxu0 0
      %1876 = vmatprep.subr.bf16.mxu0 0
      %1877 = vmatpush1.bf16.msra.mxu0 0
      %1878 = vmatprep.subr.bf16.mxu0 0
      %1879 = vmatpush1.bf16.msra.mxu0 0
      %1880 = vmatprep.subr.bf16.mxu0 0
      %1881 = vmatpush1.bf16.msra.mxu0 0
      %1882 = vmatprep.mubr.bf16.mxu0 0
      %1883 = vmatmul.mubr.bf16.gmra.mrb[0].mxu0 %v1803
      %v1884 = vpop.f32.mrb[0].mxu0
      %v1885 = vadd.f32 %v1776, %v1884
      %v1886 = vpop.f32.mrb[0].mxu0
      %v1887 = vpop.f32.mrb[0].mxu0
      %v1888 = vadd.f32 %v1776, %v1887
      %v1889 = vpop.f32.mrb[0].mxu0
      %1890 = vmatprep.mubr.bf16.mxu0 0
      %1891 = vmatmul.mubr.bf16.gmra.mrb[0].mxu0 %v1806
      %v1892 = vpop.f32.mrb[0].mxu0
      %v1893 = vadd.f32 %v1776, %v1892
      %v1894 = vpop.f32.mrb[0].mxu0
      %v1895 = vpop.f32.mrb[0].mxu0
      %v1896 = vadd.f32 %v1776, %v1895
      %v1897 = vpop.f32.mrb[0].mxu0
      %1898 = vmatprep.mubr.bf16.mxu0 0
      %1899 = vmatmul.mubr.bf16.gmra.mrb[0].mxu0 %v1809
      %v1900 = vpop.f32.mrb[0].mxu0
      %v1901 = vadd.f32 %v1776, %v1900
      %v1902 = vpop.f32.mrb[0].mxu0
      %v1903 = vpop.f32.mrb[0].mxu0
      %v1904 = vadd.f32 %v1776, %v1903
      %v1905 = vpop.f32.mrb[0].mxu0
      %1906 = vmatprep.mubr.bf16.mxu0 0
      %1907 = vmatmul.mubr.bf16.gmra.mrb[0].mxu0 %v1812
      %v1908 = vpop.f32.mrb[0].mxu0
      %v1909 = vadd.f32 %v1776, %v1908
      %v1910 = vpop.f32.mrb[0].mxu0
      %v1911 = vpop.f32.mrb[0].mxu0
      %v1912 = vadd.f32 %v1776, %v1911
      %v1913 = vpop.f32.mrb[0].mxu0
      %1914 = vmatprep.mubr.bf16.mxu0 0
      %1915 = vmatmul.mubr.bf16.gmra.mrb[0].mxu0 %v1815
      %v1916 = vpop.f32.mrb[0].mxu0
      %v1917 = vadd.f32 %v1776, %v1916
      %v1918 = vpop.f32.mrb[0].mxu0
      %v1919 = vpop.f32.mrb[0].mxu0
      %v1920 = vadd.f32 %v1776, %v1919
      %v1921 = vpop.f32.mrb[0].mxu0
      %1922 = vmatprep.mubr.bf16.mxu0 0
      %1923 = vmatmul.mubr.bf16.gmra.mrb[0].mxu0 %v1818
      %v1924 = vpop.f32.mrb[0].mxu0
      %v1925 = vadd.f32 %v1776, %v1924
      %v1926 = vpop.f32.mrb[0].mxu0
      %v1927 = vpop.f32.mrb[0].mxu0
      %v1928 = vadd.f32 %v1776, %v1927
      %v1929 = vpop.f32.mrb[0].mxu0
      %1930 = vmatprep.mubr.bf16.mxu0 0
      %1931 = vmatmul.mubr.bf16.gmra.mrb[0].mxu0 %v1821
      %v1932 = vpop.f32.mrb[0].mxu0
      %v1933 = vadd.f32 %v1776, %v1932
      %v1934 = vpop.f32.mrb[0].mxu0
      %v1935 = vpop.f32.mrb[0].mxu0
      %v1936 = vadd.f32 %v1776, %v1935
      %v1937 = vpop.f32.mrb[0].mxu0
      %1938 = vmatprep.mubr.bf16.mxu0 0
      %1939 = vmatmul.mubr.bf16.gmra.mrb[0].mxu0 %v1824
      %v1940 = vpop.f32.mrb[0].mxu0
      %v1941 = vadd.f32 %v1776, %v1940
      %v1942 = vpop.f32.mrb[0].mxu0
      %v1943 = vpop.f32.mrb[0].mxu0
      %v1944 = vadd.f32 %v1776, %v1943
      %v1945 = vpop.f32.mrb[0].mxu0
      %1946 = vmatprep.mubr.bf16.mxu0 0
      %1947 = vmatmul.mubr.bf16.gmra.mrb[0].mxu0 %v1827
      %v1948 = vpop.f32.mrb[0].mxu0
      %v1949 = vadd.f32 %v1776, %v1948
      %v1950 = vpop.f32.mrb[0].mxu0
      %v1951 = vpop.f32.mrb[0].mxu0
      %v1952 = vadd.f32 %v1776, %v1951
      %v1953 = vpop.f32.mrb[0].mxu0
      %1954 = vmatprep.mubr.bf16.mxu0 0
      %1955 = vmatmul.mubr.bf16.gmra.mrb[0].mxu0 %v1830
      %v1956 = vpop.f32.mrb[0].mxu0
      %v1957 = vadd.f32 %v1776, %v1956
      %v1958 = vpop.f32.mrb[0].mxu0
      %v1959 = vpop.f32.mrb[0].mxu0
      %v1960 = vadd.f32 %v1776, %v1959
      %v1961 = vpop.f32.mrb[0].mxu0
      %1962 = vmatprep.mubr.bf16.mxu0 0
      %1963 = vmatmul.mubr.bf16.gmra.mrb[0].mxu0 %v1833
      %v1964 = vpop.f32.mrb[0].mxu0
      %v1965 = vadd.f32 %v1776, %v1964
      %v1966 = vpop.f32.mrb[0].mxu0
      %v1967 = vpop.f32.mrb[0].mxu0
      %v1968 = vadd.f32 %v1776, %v1967
      %v1969 = vpop.f32.mrb[0].mxu0
      %1970 = vmatprep.mubr.bf16.mxu0 0
      %1971 = vmatmul.mubr.bf16.gmra.mrb[0].mxu0 %v1836
      %v1972 = vpop.f32.mrb[0].mxu0
      %v1973 = vadd.f32 %v1776, %v1972
      %v1974 = vpop.f32.mrb[0].mxu0
      %v1975 = vpop.f32.mrb[0].mxu0
      %v1976 = vadd.f32 %v1776, %v1975
      %v1977 = vpop.f32.mrb[0].mxu0
      %1978 = vmatprep.mubr.bf16.mxu0 0
      %1979 = vmatmul.mubr.bf16.gmra.mrb[0].mxu0 %v1839
      %v1980 = vpop.f32.mrb[0].mxu0
      %v1981 = vadd.f32 %v1776, %v1980
      %v1982 = vpop.f32.mrb[0].mxu0
      %v1983 = vpop.f32.mrb[0].mxu0
      %v1984 = vadd.f32 %v1776, %v1983
      %v1985 = vpop.f32.mrb[0].mxu0
      %1986 = vmatprep.mubr.bf16.mxu0 0
      %1987 = vmatmul.mubr.bf16.gmra.mrb[0].mxu0 %v1842
      %v1988 = vpop.f32.mrb[0].mxu0
      %v1989 = vadd.f32 %v1776, %v1988
      %v1990 = vpop.f32.mrb[0].mxu0
      %v1991 = vpop.f32.mrb[0].mxu0
      %v1992 = vadd.f32 %v1776, %v1991
      %v1993 = vpop.f32.mrb[0].mxu0
      %1994 = vmatprep.mubr.bf16.mxu0 0
      %1995 = vmatmul.mubr.bf16.gmra.mrb[0].mxu0 %v1845
      %v1996 = vpop.f32.mrb[0].mxu0
      %v1997 = vadd.f32 %v1776, %v1996
      %v1998 = vpop.f32.mrb[0].mxu0
      %v1999 = vpop.f32.mrb[0].mxu0
      %v2000 = vadd.f32 %v1776, %v1999
      %v2001 = vpop.f32.mrb[0].mxu0
      %2002 = vmatprep.mubr.bf16.mxu0 0
      %2003 = vmatmul.mubr.bf16.gmra.mrb[0].mxu0 %v1848
      %v2004 = vpop.f32.mrb[0].mxu0
      %v2005 = vadd.f32 %v1776, %v2004
      %v2006 = vpop.f32.mrb[0].mxu0
      %v2007 = vpop.f32.mrb[0].mxu0
      %v2008 = vadd.f32 %v1776, %v2007
      %v2009 = vpop.f32.mrb[0].mxu0
      %2010 = vdwg.mxu0
      %vm2011 = vcmp.gt.f32.partialorder %v1885, 0.0
      %vm2012 = vcmp.gt.f32.partialorder %v1888, 0.0
      %vm2013 = vcmp.gt.f32.partialorder %v1893, 0.0
      %vm2014 = vcmp.gt.f32.partialorder %v1896, 0.0
      %vm2015 = vcmp.gt.f32.partialorder %v1901, 0.0
      %vm2016 = vcmp.gt.f32.partialorder %v1904, 0.0
      %vm2017 = vcmp.gt.f32.partialorder %v1909, 0.0
      %vm2018 = vcmp.gt.f32.partialorder %v1912, 0.0
      %vm2019 = vcmp.gt.f32.partialorder %v1917, 0.0
      %vm2020 = vcmp.gt.f32.partialorder %v1920, 0.0
      %vm2021 = vcmp.gt.f32.partialorder %v1925, 0.0
      %vm2022 = vcmp.gt.f32.partialorder %v1928, 0.0
      %vm2023 = vcmp.gt.f32.partialorder %v1933, 0.0
      %vm2024 = vcmp.gt.f32.partialorder %v1936, 0.0
      %vm2025 = vcmp.gt.f32.partialorder %v1941, 0.0
      %vm2026 = vcmp.gt.f32.partialorder %v1944, 0.0
      %vm2027 = vcmp.gt.f32.partialorder %v1949, 0.0
      %vm2028 = vcmp.gt.f32.partialorder %v1952, 0.0
      %vm2029 = vcmp.gt.f32.partialorder %v1957, 0.0
      %vm2030 = vcmp.gt.f32.partialorder %v1960, 0.0
      %vm2031 = vcmp.gt.f32.partialorder %v1965, 0.0
      %vm2032 = vcmp.gt.f32.partialorder %v1968, 0.0
      %vm2033 = vcmp.gt.f32.partialorder %v1973, 0.0
      %vm2034 = vcmp.gt.f32.partialorder %v1976, 0.0
      %vm2035 = vcmp.gt.f32.partialorder %v1981, 0.0
      %vm2036 = vcmp.gt.f32.partialorder %v1984, 0.0
      %vm2037 = vcmp.gt.f32.partialorder %v1989, 0.0
      %vm2038 = vcmp.gt.f32.partialorder %v1992, 0.0
      %vm2039 = vcmp.gt.f32.partialorder %v1997, 0.0
      %vm2040 = vcmp.gt.f32.partialorder %v2000, 0.0
      %vm2041 = vcmp.gt.f32.partialorder %v2005, 0.0
      %vm2042 = vcmp.gt.f32.partialorder %v2008, 0.0
      %v2043 = vmul.f32 %v1885, 0.01
      %v2044 = vmul.f32 %v1888, 0.01
      %v2045 = vmul.f32 %v1893, 0.01
      %v2046 = vmul.f32 %v1896, 0.01
      %v2047 = vmul.f32 %v1901, 0.01
      %v2048 = vmul.f32 %v1904, 0.01
      %v2049 = vmul.f32 %v1909, 0.01
      %v2050 = vmul.f32 %v1912, 0.01
      %v2051 = vmul.f32 %v1917, 0.01
      %v2052 = vmul.f32 %v1920, 0.01
      %v2053 = vmul.f32 %v1925, 0.01
      %v2054 = vmul.f32 %v1928, 0.01
      %v2055 = vmul.f32 %v1933, 0.01
      %v2056 = vmul.f32 %v1936, 0.01
      %v2057 = vmul.f32 %v1941, 0.01
      %v2058 = vmul.f32 %v1944, 0.01
      %v2059 = vmul.f32 %v1949, 0.01
      %v2060 = vmul.f32 %v1952, 0.01
      %v2061 = vmul.f32 %v1957, 0.01
      %v2062 = vmul.f32 %v1960, 0.01
      %v2063 = vmul.f32 %v1965, 0.01
      %v2064 = vmul.f32 %v1968, 0.01
      %v2065 = vmul.f32 %v1973, 0.01
      %v2066 = vmul.f32 %v1976, 0.01
      %v2067 = vmul.f32 %v1981, 0.01
      %v2068 = vmul.f32 %v1984, 0.01
      %v2069 = vmul.f32 %v1989, 0.01
      %v2070 = vmul.f32 %v1992, 0.01
      %v2071 = vmul.f32 %v1997, 0.01
      %v2072 = vmul.f32 %v2000, 0.01
      %v2073 = vmul.f32 %v2005, 0.01
      %v2074 = vmul.f32 %v2008, 0.01
      %v2075 = vsel %vm2011, %v1885, %v2043
      %v2076 = vsel %vm2012, %v1888, %v2044
      %v2077 = vsel %vm2013, %v1893, %v2045
      %v2078 = vsel %vm2014, %v1896, %v2046
      %v2079 = vsel %vm2015, %v1901, %v2047
      %v2080 = vsel %vm2016, %v1904, %v2048
      %v2081 = vsel %vm2017, %v1909, %v2049
      %v2082 = vsel %vm2018, %v1912, %v2050
      %v2083 = vsel %vm2019, %v1917, %v2051
      %v2084 = vsel %vm2020, %v1920, %v2052
      %v2085 = vsel %vm2021, %v1925, %v2053
      %v2086 = vsel %vm2022, %v1928, %v2054
      %v2087 = vsel %vm2023, %v1933, %v2055
      %v2088 = vsel %vm2024, %v1936, %v2056
      %v2089 = vsel %vm2025, %v1941, %v2057
      %v2090 = vsel %vm2026, %v1944, %v2058
      %v2091 = vsel %vm2027, %v1949, %v2059
      %v2092 = vsel %vm2028, %v1952, %v2060
      %v2093 = vsel %vm2029, %v1957, %v2061
      %v2094 = vsel %vm2030, %v1960, %v2062
      %v2095 = vsel %vm2031, %v1965, %v2063
      %v2096 = vsel %vm2032, %v1968, %v2064
      %v2097 = vsel %vm2033, %v1973, %v2065
      %v2098 = vsel %vm2034, %v1976, %v2066
      %v2099 = vsel %vm2035, %v1981, %v2067
      %v2100 = vsel %vm2036, %v1984, %v2068
      %v2101 = vsel %vm2037, %v1989, %v2069
      %v2102 = vsel %vm2038, %v1992, %v2070
      %v2103 = vsel %vm2039, %v1997, %v2071
      %v2104 = vsel %vm2040, %v2000, %v2072
      %v2105 = vsel %vm2041, %v2005, %v2073
      %v2106 = vsel %vm2042, %v2008, %v2074
      %s2107 = scalar_lea.vmem %s3, 128
      %v2108 = vld [vmem:[%s2107] sm:$0xf]
      %v2109 = vld [vmem:[%s2107 + $0x4] sm:$0xf]
      %v2110 = vld [vmem:[%s2107 + $0x8] sm:$0xf]
      %v2111 = vld [vmem:[%s2107 + $0xc] sm:$0xf]
      %v2112 = vld [vmem:[%s2107 + $0x10] sm:$0xf]
      %v2113 = vld [vmem:[%s2107 + $0x14] sm:$0xf]
      %v2114 = vld [vmem:[%s2107 + $0x18] sm:$0xf]
      %v2115 = vld [vmem:[%s2107 + $0x1c] sm:$0xf]
      %s2116 = scalar_lea.vmem %s4, 4
      %v2117 = vld [vmem:[%s2116] sm:$0x1]
      %v2118 = vpack.c.bf16 %v2076, %v2075
      %v2119 = vpack.c.bf16 %v2078, %v2077
      %v2120 = vpack.c.bf16 %v2080, %v2079
      %v2121 = vpack.c.bf16 %v2082, %v2081
      %v2122 = vpack.c.bf16 %v2084, %v2083
      %v2123 = vpack.c.bf16 %v2086, %v2085
      %v2124 = vpack.c.bf16 %v2088, %v2087
      %v2125 = vpack.c.bf16 %v2090, %v2089
      %v2126 = vpack.c.bf16 %v2092, %v2091
      %v2127 = vpack.c.bf16 %v2094, %v2093
      %v2128 = vpack.c.bf16 %v2096, %v2095
      %v2129 = vpack.c.bf16 %v2098, %v2097
      %v2130 = vpack.c.bf16 %v2100, %v2099
      %v2131 = vpack.c.bf16 %v2102, %v2101
      %v2132 = vpack.c.bf16 %v2104, %v2103
      %v2133 = vpack.c.bf16 %v2106, %v2105
      %v2135 = vlaneseq
      %v2136 = vshrl.u32 %v2135, 7
      %v2137 = vsub.s32 0, %v2136
      %v2138 = vrot.slane %v2117, %v2137
      %v2148 = vunpack.c.l.b16 %v2108
      %v2149 = vunpack.c.l.b16 %v2109
      %v2150 = vunpack.c.l.b16 %v2110
      %v2151 = vunpack.c.l.b16 %v2111
      %v2152 = vunpack.c.l.b16 %v2112
      %v2153 = vunpack.c.l.b16 %v2113
      %v2154 = vunpack.c.l.b16 %v2114
      %v2155 = vunpack.c.l.b16 %v2115
      %v2156 = vpack.c.b16 %v2149, %v2148
      %v2157 = vpack.c.b16 %v2151, %v2150
      %v2158 = vpack.c.b16 %v2153, %v2152
      %v2159 = vpack.c.b16 %v2155, %v2154
      %v2165 = vsel %vm715, %v2118, 0
      %v2168 = vsel %vm715, %v2119, 0
      %v2171 = vsel %vm715, %v2120, 0
      %v2174 = vsel %vm715, %v2121, 0
      %v2177 = vsel %vm715, %v2122, 0
      %v2180 = vsel %vm715, %v2123, 0
      %v2183 = vsel %vm715, %v2124, 0
      %v2186 = vsel %vm715, %v2125, 0
      %v2189 = vsel %vm715, %v2126, 0
      %v2192 = vsel %vm715, %v2127, 0
      %v2195 = vsel %vm715, %v2128, 0
      %v2198 = vsel %vm715, %v2129, 0
      %v2201 = vsel %vm715, %v2130, 0
      %v2204 = vsel %vm715, %v2131, 0
      %v2207 = vsel %vm715, %v2132, 0
      %v2210 = vsel %vm715, %v2133, 0
      %2212 = vmatprep.subr.bf16.mxu0 0
      %2213 = vmatpush1.bf16.msra.mxu0 %v2156
      %2214 = vmatprep.subr.bf16.mxu0 0
      %2215 = vmatpush1.bf16.msra.mxu0 %v2157
      %2216 = vmatprep.subr.bf16.mxu0 0
      %2217 = vmatpush1.bf16.msra.mxu0 %v2158
      %2218 = vmatprep.subr.bf16.mxu0 0
      %2219 = vmatpush1.bf16.msra.mxu0 %v2159
      %2220 = vmatprep.subr.bf16.mxu0 0
      %2221 = vmatpush1.bf16.msra.mxu0 0
      %2222 = vmatprep.subr.bf16.mxu0 0
      %2223 = vmatpush1.bf16.msra.mxu0 0
      %2224 = vmatprep.subr.bf16.mxu0 0
      %2225 = vmatpush1.bf16.msra.mxu0 0
      %2226 = vmatprep.subr.bf16.mxu0 0
      %2227 = vmatpush1.bf16.msra.mxu0 0
      %2228 = vmatprep.subr.bf16.mxu0 0
      %2229 = vmatpush1.bf16.msra.mxu0 0
      %2230 = vmatprep.subr.bf16.mxu0 0
      %2231 = vmatpush1.bf16.msra.mxu0 0
      %2232 = vmatprep.subr.bf16.mxu0 0
      %2233 = vmatpush1.bf16.msra.mxu0 0
      %2234 = vmatprep.subr.bf16.mxu0 0
      %2235 = vmatpush1.bf16.msra.mxu0 0
      %2236 = vmatprep.subr.bf16.mxu0 0
      %2237 = vmatpush1.bf16.msra.mxu0 0
      %2238 = vmatprep.subr.bf16.mxu0 0
      %2239 = vmatpush1.bf16.msra.mxu0 0
      %2240 = vmatprep.subr.bf16.mxu0 0
      %2241 = vmatpush1.bf16.msra.mxu0 0
      %2242 = vmatprep.subr.bf16.mxu0 0
      %2243 = vmatpush1.bf16.msra.mxu0 0
      %2244 = vmatprep.mubr.bf16.mxu0 0
      %2245 = vmatmul.mubr.bf16.gmra.mrb[0].mxu0 %v2165
      %v2246 = vpop.f32.mrb[0].mxu0
      %v2247 = vadd.f32 %v2138, %v2246
      %v2248 = vpop.f32.mrb[0].mxu0
      %v2249 = vpop.f32.mrb[0].mxu0
      %v2250 = vadd.f32 %v2138, %v2249
      %v2251 = vpop.f32.mrb[0].mxu0
      %2252 = vmatprep.mubr.bf16.mxu0 0
      %2253 = vmatmul.mubr.bf16.gmra.mrb[0].mxu0 %v2168
      %v2254 = vpop.f32.mrb[0].mxu0
      %v2255 = vadd.f32 %v2138, %v2254
      %v2256 = vpop.f32.mrb[0].mxu0
      %v2257 = vpop.f32.mrb[0].mxu0
      %v2258 = vadd.f32 %v2138, %v2257
      %v2259 = vpop.f32.mrb[0].mxu0
      %2260 = vmatprep.mubr.bf16.mxu0 0
      %2261 = vmatmul.mubr.bf16.gmra.mrb[0].mxu0 %v2171
      %v2262 = vpop.f32.mrb[0].mxu0
      %v2263 = vadd.f32 %v2138, %v2262
      %v2264 = vpop.f32.mrb[0].mxu0
      %v2265 = vpop.f32.mrb[0].mxu0
      %v2266 = vadd.f32 %v2138, %v2265
      %v2267 = vpop.f32.mrb[0].mxu0
      %2268 = vmatprep.mubr.bf16.mxu0 0
      %2269 = vmatmul.mubr.bf16.gmra.mrb[0].mxu0 %v2174
      %v2270 = vpop.f32.mrb[0].mxu0
      %v2271 = vadd.f32 %v2138, %v2270
      %v2272 = vpop.f32.mrb[0].mxu0
      %v2273 = vpop.f32.mrb[0].mxu0
      %v2274 = vadd.f32 %v2138, %v2273
      %v2275 = vpop.f32.mrb[0].mxu0
      %2276 = vmatprep.mubr.bf16.mxu0 0
      %2277 = vmatmul.mubr.bf16.gmra.mrb[0].mxu0 %v2177
      %v2278 = vpop.f32.mrb[0].mxu0
      %v2279 = vadd.f32 %v2138, %v2278
      %v2280 = vpop.f32.mrb[0].mxu0
      %v2281 = vpop.f32.mrb[0].mxu0
      %v2282 = vadd.f32 %v2138, %v2281
      %v2283 = vpop.f32.mrb[0].mxu0
      %2284 = vmatprep.mubr.bf16.mxu0 0
      %2285 = vmatmul.mubr.bf16.gmra.mrb[0].mxu0 %v2180
      %v2286 = vpop.f32.mrb[0].mxu0
      %v2287 = vadd.f32 %v2138, %v2286
      %v2288 = vpop.f32.mrb[0].mxu0
      %v2289 = vpop.f32.mrb[0].mxu0
      %v2290 = vadd.f32 %v2138, %v2289
      %v2291 = vpop.f32.mrb[0].mxu0
      %2292 = vmatprep.mubr.bf16.mxu0 0
      %2293 = vmatmul.mubr.bf16.gmra.mrb[0].mxu0 %v2183
      %v2294 = vpop.f32.mrb[0].mxu0
      %v2295 = vadd.f32 %v2138, %v2294
      %v2296 = vpop.f32.mrb[0].mxu0
      %v2297 = vpop.f32.mrb[0].mxu0
      %v2298 = vadd.f32 %v2138, %v2297
      %v2299 = vpop.f32.mrb[0].mxu0
      %2300 = vmatprep.mubr.bf16.mxu0 0
      %2301 = vmatmul.mubr.bf16.gmra.mrb[0].mxu0 %v2186
      %v2302 = vpop.f32.mrb[0].mxu0
      %v2303 = vadd.f32 %v2138, %v2302
      %v2304 = vpop.f32.mrb[0].mxu0
      %v2305 = vpop.f32.mrb[0].mxu0
      %v2306 = vadd.f32 %v2138, %v2305
      %v2307 = vpop.f32.mrb[0].mxu0
      %2308 = vmatprep.mubr.bf16.mxu0 0
      %2309 = vmatmul.mubr.bf16.gmra.mrb[0].mxu0 %v2189
      %v2310 = vpop.f32.mrb[0].mxu0
      %v2311 = vadd.f32 %v2138, %v2310
      %v2312 = vpop.f32.mrb[0].mxu0
      %v2313 = vpop.f32.mrb[0].mxu0
      %v2314 = vadd.f32 %v2138, %v2313
      %v2315 = vpop.f32.mrb[0].mxu0
      %2316 = vmatprep.mubr.bf16.mxu0 0
      %2317 = vmatmul.mubr.bf16.gmra.mrb[0].mxu0 %v2192
      %v2318 = vpop.f32.mrb[0].mxu0
      %v2319 = vadd.f32 %v2138, %v2318
      %v2320 = vpop.f32.mrb[0].mxu0
      %v2321 = vpop.f32.mrb[0].mxu0
      %v2322 = vadd.f32 %v2138, %v2321
      %v2323 = vpop.f32.mrb[0].mxu0
      %2324 = vmatprep.mubr.bf16.mxu0 0
      %2325 = vmatmul.mubr.bf16.gmra.mrb[0].mxu0 %v2195
      %v2326 = vpop.f32.mrb[0].mxu0
      %v2327 = vadd.f32 %v2138, %v2326
      %v2328 = vpop.f32.mrb[0].mxu0
      %v2329 = vpop.f32.mrb[0].mxu0
      %v2330 = vadd.f32 %v2138, %v2329
      %v2331 = vpop.f32.mrb[0].mxu0
      %2332 = vmatprep.mubr.bf16.mxu0 0
      %2333 = vmatmul.mubr.bf16.gmra.mrb[0].mxu0 %v2198
      %v2334 = vpop.f32.mrb[0].mxu0
      %v2335 = vadd.f32 %v2138, %v2334
      %v2336 = vpop.f32.mrb[0].mxu0
      %v2337 = vpop.f32.mrb[0].mxu0
      %v2338 = vadd.f32 %v2138, %v2337
      %v2339 = vpop.f32.mrb[0].mxu0
      %2340 = vmatprep.mubr.bf16.mxu0 0
      %2341 = vmatmul.mubr.bf16.gmra.mrb[0].mxu0 %v2201
      %v2342 = vpop.f32.mrb[0].mxu0
      %v2343 = vadd.f32 %v2138, %v2342
      %v2344 = vpop.f32.mrb[0].mxu0
      %v2345 = vpop.f32.mrb[0].mxu0
      %v2346 = vadd.f32 %v2138, %v2345
      %v2347 = vpop.f32.mrb[0].mxu0
      %2348 = vmatprep.mubr.bf16.mxu0 0
      %2349 = vmatmul.mubr.bf16.gmra.mrb[0].mxu0 %v2204
      %v2350 = vpop.f32.mrb[0].mxu0
      %v2351 = vadd.f32 %v2138, %v2350
      %v2352 = vpop.f32.mrb[0].mxu0
      %v2353 = vpop.f32.mrb[0].mxu0
      %v2354 = vadd.f32 %v2138, %v2353
      %v2355 = vpop.f32.mrb[0].mxu0
      %2356 = vmatprep.mubr.bf16.mxu0 0
      %2357 = vmatmul.mubr.bf16.gmra.mrb[0].mxu0 %v2207
      %v2358 = vpop.f32.mrb[0].mxu0
      %v2359 = vadd.f32 %v2138, %v2358
      %v2360 = vpop.f32.mrb[0].mxu0
      %v2361 = vpop.f32.mrb[0].mxu0
      %v2362 = vadd.f32 %v2138, %v2361
      %v2363 = vpop.f32.mrb[0].mxu0
      %2364 = vmatprep.mubr.bf16.mxu0 0
      %2365 = vmatmul.mubr.bf16.gmra.mrb[0].mxu0 %v2210
      %v2366 = vpop.f32.mrb[0].mxu0
      %v2367 = vadd.f32 %v2138, %v2366
      %v2368 = vpop.f32.mrb[0].mxu0
      %v2369 = vpop.f32.mrb[0].mxu0
      %v2370 = vadd.f32 %v2138, %v2369
      %v2371 = vpop.f32.mrb[0].mxu0
      %2372 = vdwg.mxu0
      %vm2373 = vcmp.gt.f32.partialorder %v2247, 0.0
      %vm2374 = vcmp.gt.f32.partialorder %v2250, 0.0
      %vm2375 = vcmp.gt.f32.partialorder %v2255, 0.0
      %vm2376 = vcmp.gt.f32.partialorder %v2258, 0.0
      %vm2377 = vcmp.gt.f32.partialorder %v2263, 0.0
      %vm2378 = vcmp.gt.f32.partialorder %v2266, 0.0
      %vm2379 = vcmp.gt.f32.partialorder %v2271, 0.0
      %vm2380 = vcmp.gt.f32.partialorder %v2274, 0.0
      %vm2381 = vcmp.gt.f32.partialorder %v2279, 0.0
      %vm2382 = vcmp.gt.f32.partialorder %v2282, 0.0
      %vm2383 = vcmp.gt.f32.partialorder %v2287, 0.0
      %vm2384 = vcmp.gt.f32.partialorder %v2290, 0.0
      %vm2385 = vcmp.gt.f32.partialorder %v2295, 0.0
      %vm2386 = vcmp.gt.f32.partialorder %v2298, 0.0
      %vm2387 = vcmp.gt.f32.partialorder %v2303, 0.0
      %vm2388 = vcmp.gt.f32.partialorder %v2306, 0.0
      %vm2389 = vcmp.gt.f32.partialorder %v2311, 0.0
      %vm2390 = vcmp.gt.f32.partialorder %v2314, 0.0
      %vm2391 = vcmp.gt.f32.partialorder %v2319, 0.0
      %vm2392 = vcmp.gt.f32.partialorder %v2322, 0.0
      %vm2393 = vcmp.gt.f32.partialorder %v2327, 0.0
      %vm2394 = vcmp.gt.f32.partialorder %v2330, 0.0
      %vm2395 = vcmp.gt.f32.partialorder %v2335, 0.0
      %vm2396 = vcmp.gt.f32.partialorder %v2338, 0.0
      %vm2397 = vcmp.gt.f32.partialorder %v2343, 0.0
      %vm2398 = vcmp.gt.f32.partialorder %v2346, 0.0
      %vm2399 = vcmp.gt.f32.partialorder %v2351, 0.0
      %vm2400 = vcmp.gt.f32.partialorder %v2354, 0.0
      %vm2401 = vcmp.gt.f32.partialorder %v2359, 0.0
      %vm2402 = vcmp.gt.f32.partialorder %v2362, 0.0
      %vm2403 = vcmp.gt.f32.partialorder %v2367, 0.0
      %vm2404 = vcmp.gt.f32.partialorder %v2370, 0.0
      %v2405 = vmul.f32 %v2247, 0.01
      %v2406 = vmul.f32 %v2250, 0.01
      %v2407 = vmul.f32 %v2255, 0.01
      %v2408 = vmul.f32 %v2258, 0.01
      %v2409 = vmul.f32 %v2263, 0.01
      %v2410 = vmul.f32 %v2266, 0.01
      %v2411 = vmul.f32 %v2271, 0.01
      %v2412 = vmul.f32 %v2274, 0.01
      %v2413 = vmul.f32 %v2279, 0.01
      %v2414 = vmul.f32 %v2282, 0.01
      %v2415 = vmul.f32 %v2287, 0.01
      %v2416 = vmul.f32 %v2290, 0.01
      %v2417 = vmul.f32 %v2295, 0.01
      %v2418 = vmul.f32 %v2298, 0.01
      %v2419 = vmul.f32 %v2303, 0.01
      %v2420 = vmul.f32 %v2306, 0.01
      %v2421 = vmul.f32 %v2311, 0.01
      %v2422 = vmul.f32 %v2314, 0.01
      %v2423 = vmul.f32 %v2319, 0.01
      %v2424 = vmul.f32 %v2322, 0.01
      %v2425 = vmul.f32 %v2327, 0.01
      %v2426 = vmul.f32 %v2330, 0.01
      %v2427 = vmul.f32 %v2335, 0.01
      %v2428 = vmul.f32 %v2338, 0.01
      %v2429 = vmul.f32 %v2343, 0.01
      %v2430 = vmul.f32 %v2346, 0.01
      %v2431 = vmul.f32 %v2351, 0.01
      %v2432 = vmul.f32 %v2354, 0.01
      %v2433 = vmul.f32 %v2359, 0.01
      %v2434 = vmul.f32 %v2362, 0.01
      %v2435 = vmul.f32 %v2367, 0.01
      %v2436 = vmul.f32 %v2370, 0.01
      %v2437 = vsel %vm2373, %v2247, %v2405
      %v2438 = vsel %vm2374, %v2250, %v2406
      %v2439 = vsel %vm2375, %v2255, %v2407
      %v2440 = vsel %vm2376, %v2258, %v2408
      %v2441 = vsel %vm2377, %v2263, %v2409
      %v2442 = vsel %vm2378, %v2266, %v2410
      %v2443 = vsel %vm2379, %v2271, %v2411
      %v2444 = vsel %vm2380, %v2274, %v2412
      %v2445 = vsel %vm2381, %v2279, %v2413
      %v2446 = vsel %vm2382, %v2282, %v2414
      %v2447 = vsel %vm2383, %v2287, %v2415
      %v2448 = vsel %vm2384, %v2290, %v2416
      %v2449 = vsel %vm2385, %v2295, %v2417
      %v2450 = vsel %vm2386, %v2298, %v2418
      %v2451 = vsel %vm2387, %v2303, %v2419
      %v2452 = vsel %vm2388, %v2306, %v2420
      %v2453 = vsel %vm2389, %v2311, %v2421
      %v2454 = vsel %vm2390, %v2314, %v2422
      %v2455 = vsel %vm2391, %v2319, %v2423
      %v2456 = vsel %vm2392, %v2322, %v2424
      %v2457 = vsel %vm2393, %v2327, %v2425
      %v2458 = vsel %vm2394, %v2330, %v2426
      %v2459 = vsel %vm2395, %v2335, %v2427
      %v2460 = vsel %vm2396, %v2338, %v2428
      %v2461 = vsel %vm2397, %v2343, %v2429
      %v2462 = vsel %vm2398, %v2346, %v2430
      %v2463 = vsel %vm2399, %v2351, %v2431
      %v2464 = vsel %vm2400, %v2354, %v2432
      %v2465 = vsel %vm2401, %v2359, %v2433
      %v2466 = vsel %vm2402, %v2362, %v2434
      %v2467 = vsel %vm2403, %v2367, %v2435
      %v2468 = vsel %vm2404, %v2370, %v2436
      %v2469 = vadd.f32 %v2437, %v1713
      %v2470 = vadd.f32 %v2438, %v1714
      %v2471 = vadd.f32 %v2439, %v1715
      %v2472 = vadd.f32 %v2440, %v1716
      %v2473 = vadd.f32 %v2441, %v1717
      %v2474 = vadd.f32 %v2442, %v1718
      %v2475 = vadd.f32 %v2443, %v1719
      %v2476 = vadd.f32 %v2444, %v1720
      %v2477 = vadd.f32 %v2445, %v1721
      %v2478 = vadd.f32 %v2446, %v1722
      %v2479 = vadd.f32 %v2447, %v1723
      %v2480 = vadd.f32 %v2448, %v1724
      %v2481 = vadd.f32 %v2449, %v1725
      %v2482 = vadd.f32 %v2450, %v1726
      %v2483 = vadd.f32 %v2451, %v1727
      %v2484 = vadd.f32 %v2452, %v1728
      %v2485 = vadd.f32 %v2453, %v1729
      %v2486 = vadd.f32 %v2454, %v1730
      %v2487 = vadd.f32 %v2455, %v1731
      %v2488 = vadd.f32 %v2456, %v1732
      %v2489 = vadd.f32 %v2457, %v1733
      %v2490 = vadd.f32 %v2458, %v1734
      %v2491 = vadd.f32 %v2459, %v1735
      %v2492 = vadd.f32 %v2460, %v1736
      %v2493 = vadd.f32 %v2461, %v1737
      %v2494 = vadd.f32 %v2462, %v1738
      %v2495 = vadd.f32 %v2463, %v1739
      %v2496 = vadd.f32 %v2464, %v1740
      %v2497 = vadd.f32 %v2465, %v1741
      %v2498 = vadd.f32 %v2466, %v1742
      %v2499 = vadd.f32 %v2467, %v1743
      %v2500 = vadd.f32 %v2468, %v1744
      %v2501 = vpack.c.bf16 %v2470, %v2469
      %v2502 = vpack.c.bf16 %v2472, %v2471
      %v2503 = vpack.c.bf16 %v2474, %v2473
      %v2504 = vpack.c.bf16 %v2476, %v2475
      %v2505 = vpack.c.bf16 %v2478, %v2477
      %v2506 = vpack.c.bf16 %v2480, %v2479
      %v2507 = vpack.c.bf16 %v2482, %v2481
      %v2508 = vpack.c.bf16 %v2484, %v2483
      %v2509 = vpack.c.bf16 %v2486, %v2485
      %v2510 = vpack.c.bf16 %v2488, %v2487
      %v2511 = vpack.c.bf16 %v2490, %v2489
      %v2512 = vpack.c.bf16 %v2492, %v2491
      %v2513 = vpack.c.bf16 %v2494, %v2493
      %v2514 = vpack.c.bf16 %v2496, %v2495
      %v2515 = vpack.c.bf16 %v2498, %v2497
      %v2516 = vpack.c.bf16 %v2500, %v2499
      %v2517 = vld [vmem:[%s5] sm:$0xf]
      %v2518 = vld [vmem:[%s5 + $0x4] sm:$0xf]
      %v2519 = vld [vmem:[%s5 + $0x8] sm:$0xf]
      %v2520 = vld [vmem:[%s5 + $0xc] sm:$0xf]
      %v2521 = vld [vmem:[%s5 + $0x10] sm:$0xf]
      %v2522 = vld [vmem:[%s5 + $0x14] sm:$0xf]
      %v2523 = vld [vmem:[%s5 + $0x18] sm:$0xf]
      %v2524 = vld [vmem:[%s5 + $0x1c] sm:$0xf]
      %v2525 = vld [vmem:[%s6] sm:$0x1]
      %v2527 = vlaneseq
      %v2528 = vshrl.u32 %v2527, 7
      %v2529 = vsub.s32 0, %v2528
      %v2530 = vrot.slane %v2525, %v2529
      %v2540 = vunpack.c.l.b16 %v2517
      %v2541 = vunpack.c.l.b16 %v2518
      %v2542 = vunpack.c.l.b16 %v2519
      %v2543 = vunpack.c.l.b16 %v2520
      %v2544 = vunpack.c.l.b16 %v2521
      %v2545 = vunpack.c.l.b16 %v2522
      %v2546 = vunpack.c.l.b16 %v2523
      %v2547 = vunpack.c.l.b16 %v2524
      %v2548 = vpack.c.b16 %v2541, %v2540
      %v2549 = vpack.c.b16 %v2543, %v2542
      %v2550 = vpack.c.b16 %v2545, %v2544
      %v2551 = vpack.c.b16 %v2547, %v2546
      %v2557 = vsel %vm715, %v2501, 0
      %v2560 = vsel %vm715, %v2502, 0
      %v2563 = vsel %vm715, %v2503, 0
      %v2566 = vsel %vm715, %v2504, 0
      %v2569 = vsel %vm715, %v2505, 0
      %v2572 = vsel %vm715, %v2506, 0
      %v2575 = vsel %vm715, %v2507, 0
      %v2578 = vsel %vm715, %v2508, 0
      %v2581 = vsel %vm715, %v2509, 0
      %v2584 = vsel %vm715, %v2510, 0
      %v2587 = vsel %vm715, %v2511, 0
      %v2590 = vsel %vm715, %v2512, 0
      %v2593 = vsel %vm715, %v2513, 0
      %v2596 = vsel %vm715, %v2514, 0
      %v2599 = vsel %vm715, %v2515, 0
      %v2602 = vsel %vm715, %v2516, 0
      %2604 = vmatprep.subr.bf16.mxu0 0
      %2605 = vmatpush1.bf16.msra.mxu0 %v2548
      %2606 = vmatprep.subr.bf16.mxu0 0
      %2607 = vmatpush1.bf16.msra.mxu0 %v2549
      %2608 = vmatprep.subr.bf16.mxu0 0
      %2609 = vmatpush1.bf16.msra.mxu0 %v2550
      %2610 = vmatprep.subr.bf16.mxu0 0
      %2611 = vmatpush1.bf16.msra.mxu0 %v2551
      %2612 = vmatprep.subr.bf16.mxu0 0
      %2613 = vmatpush1.bf16.msra.mxu0 0
      %2614 = vmatprep.subr.bf16.mxu0 0
      %2615 = vmatpush1.bf16.msra.mxu0 0
      %2616 = vmatprep.subr.bf16.mxu0 0
      %2617 = vmatpush1.bf16.msra.mxu0 0
      %2618 = vmatprep.subr.bf16.mxu0 0
      %2619 = vmatpush1.bf16.msra.mxu0 0
      %2620 = vmatprep.subr.bf16.mxu0 0
      %2621 = vmatpush1.bf16.msra.mxu0 0
      %2622 = vmatprep.subr.bf16.mxu0 0
      %2623 = vmatpush1.bf16.msra.mxu0 0
      %2624 = vmatprep.subr.bf16.mxu0 0
      %2625 = vmatpush1.bf16.msra.mxu0 0
      %2626 = vmatprep.subr.bf16.mxu0 0
      %2627 = vmatpush1.bf16.msra.mxu0 0
      %2628 = vmatprep.subr.bf16.mxu0 0
      %2629 = vmatpush1.bf16.msra.mxu0 0
      %2630 = vmatprep.subr.bf16.mxu0 0
      %2631 = vmatpush1.bf16.msra.mxu0 0
      %2632 = vmatprep.subr.bf16.mxu0 0
      %2633 = vmatpush1.bf16.msra.mxu0 0
      %2634 = vmatprep.subr.bf16.mxu0 0
      %2635 = vmatpush1.bf16.msra.mxu0 0
      %2636 = vmatprep.mubr.bf16.mxu0 0
      %2637 = vmatmul.mubr.bf16.gmra.mrb[0].mxu0 %v2557
      %v2638 = vpop.f32.mrb[0].mxu0
      %v2639 = vadd.f32 %v2530, %v2638
      %v2640 = vpop.f32.mrb[0].mxu0
      %v2641 = vpop.f32.mrb[0].mxu0
      %v2642 = vadd.f32 %v2530, %v2641
      %v2643 = vpop.f32.mrb[0].mxu0
      %2644 = vmatprep.mubr.bf16.mxu0 0
      %2645 = vmatmul.mubr.bf16.gmra.mrb[0].mxu0 %v2560
      %v2646 = vpop.f32.mrb[0].mxu0
      %v2647 = vadd.f32 %v2530, %v2646
      %v2648 = vpop.f32.mrb[0].mxu0
      %v2649 = vpop.f32.mrb[0].mxu0
      %v2650 = vadd.f32 %v2530, %v2649
      %v2651 = vpop.f32.mrb[0].mxu0
      %2652 = vmatprep.mubr.bf16.mxu0 0
      %2653 = vmatmul.mubr.bf16.gmra.mrb[0].mxu0 %v2563
      %v2654 = vpop.f32.mrb[0].mxu0
      %v2655 = vadd.f32 %v2530, %v2654
      %v2656 = vpop.f32.mrb[0].mxu0
      %v2657 = vpop.f32.mrb[0].mxu0
      %v2658 = vadd.f32 %v2530, %v2657
      %v2659 = vpop.f32.mrb[0].mxu0
      %2660 = vmatprep.mubr.bf16.mxu0 0
      %2661 = vmatmul.mubr.bf16.gmra.mrb[0].mxu0 %v2566
      %v2662 = vpop.f32.mrb[0].mxu0
      %v2663 = vadd.f32 %v2530, %v2662
      %v2664 = vpop.f32.mrb[0].mxu0
      %v2665 = vpop.f32.mrb[0].mxu0
      %v2666 = vadd.f32 %v2530, %v2665
      %v2667 = vpop.f32.mrb[0].mxu0
      %2668 = vmatprep.mubr.bf16.mxu0 0
      %2669 = vmatmul.mubr.bf16.gmra.mrb[0].mxu0 %v2569
      %v2670 = vpop.f32.mrb[0].mxu0
      %v2671 = vadd.f32 %v2530, %v2670
      %v2672 = vpop.f32.mrb[0].mxu0
      %v2673 = vpop.f32.mrb[0].mxu0
      %v2674 = vadd.f32 %v2530, %v2673
      %v2675 = vpop.f32.mrb[0].mxu0
      %2676 = vmatprep.mubr.bf16.mxu0 0
      %2677 = vmatmul.mubr.bf16.gmra.mrb[0].mxu0 %v2572
      %v2678 = vpop.f32.mrb[0].mxu0
      %v2679 = vadd.f32 %v2530, %v2678
      %v2680 = vpop.f32.mrb[0].mxu0
      %v2681 = vpop.f32.mrb[0].mxu0
      %v2682 = vadd.f32 %v2530, %v2681
      %v2683 = vpop.f32.mrb[0].mxu0
      %2684 = vmatprep.mubr.bf16.mxu0 0
      %2685 = vmatmul.mubr.bf16.gmra.mrb[0].mxu0 %v2575
      %v2686 = vpop.f32.mrb[0].mxu0
      %v2687 = vadd.f32 %v2530, %v2686
      %v2688 = vpop.f32.mrb[0].mxu0
      %v2689 = vpop.f32.mrb[0].mxu0
      %v2690 = vadd.f32 %v2530, %v2689
      %v2691 = vpop.f32.mrb[0].mxu0
      %2692 = vmatprep.mubr.bf16.mxu0 0
      %2693 = vmatmul.mubr.bf16.gmra.mrb[0].mxu0 %v2578
      %v2694 = vpop.f32.mrb[0].mxu0
      %v2695 = vadd.f32 %v2530, %v2694
      %v2696 = vpop.f32.mrb[0].mxu0
      %v2697 = vpop.f32.mrb[0].mxu0
      %v2698 = vadd.f32 %v2530, %v2697
      %v2699 = vpop.f32.mrb[0].mxu0
      %2700 = vmatprep.mubr.bf16.mxu0 0
      %2701 = vmatmul.mubr.bf16.gmra.mrb[0].mxu0 %v2581
      %v2702 = vpop.f32.mrb[0].mxu0
      %v2703 = vadd.f32 %v2530, %v2702
      %v2704 = vpop.f32.mrb[0].mxu0
      %v2705 = vpop.f32.mrb[0].mxu0
      %v2706 = vadd.f32 %v2530, %v2705
      %v2707 = vpop.f32.mrb[0].mxu0
      %2708 = vmatprep.mubr.bf16.mxu0 0
      %2709 = vmatmul.mubr.bf16.gmra.mrb[0].mxu0 %v2584
      %v2710 = vpop.f32.mrb[0].mxu0
      %v2711 = vadd.f32 %v2530, %v2710
      %v2712 = vpop.f32.mrb[0].mxu0
      %v2713 = vpop.f32.mrb[0].mxu0
      %v2714 = vadd.f32 %v2530, %v2713
      %v2715 = vpop.f32.mrb[0].mxu0
      %2716 = vmatprep.mubr.bf16.mxu0 0
      %2717 = vmatmul.mubr.bf16.gmra.mrb[0].mxu0 %v2587
      %v2718 = vpop.f32.mrb[0].mxu0
      %v2719 = vadd.f32 %v2530, %v2718
      %v2720 = vpop.f32.mrb[0].mxu0
      %v2721 = vpop.f32.mrb[0].mxu0
      %v2722 = vadd.f32 %v2530, %v2721
      %v2723 = vpop.f32.mrb[0].mxu0
      %2724 = vmatprep.mubr.bf16.mxu0 0
      %2725 = vmatmul.mubr.bf16.gmra.mrb[0].mxu0 %v2590
      %v2726 = vpop.f32.mrb[0].mxu0
      %v2727 = vadd.f32 %v2530, %v2726
      %v2728 = vpop.f32.mrb[0].mxu0
      %v2729 = vpop.f32.mrb[0].mxu0
      %v2730 = vadd.f32 %v2530, %v2729
      %v2731 = vpop.f32.mrb[0].mxu0
      %2732 = vmatprep.mubr.bf16.mxu0 0
      %2733 = vmatmul.mubr.bf16.gmra.mrb[0].mxu0 %v2593
      %v2734 = vpop.f32.mrb[0].mxu0
      %v2735 = vadd.f32 %v2530, %v2734
      %v2736 = vpop.f32.mrb[0].mxu0
      %v2737 = vpop.f32.mrb[0].mxu0
      %v2738 = vadd.f32 %v2530, %v2737
      %v2739 = vpop.f32.mrb[0].mxu0
      %2740 = vmatprep.mubr.bf16.mxu0 0
      %2741 = vmatmul.mubr.bf16.gmra.mrb[0].mxu0 %v2596
      %v2742 = vpop.f32.mrb[0].mxu0
      %v2743 = vadd.f32 %v2530, %v2742
      %v2744 = vpop.f32.mrb[0].mxu0
      %v2745 = vpop.f32.mrb[0].mxu0
      %v2746 = vadd.f32 %v2530, %v2745
      %v2747 = vpop.f32.mrb[0].mxu0
      %2748 = vmatprep.mubr.bf16.mxu0 0
      %2749 = vmatmul.mubr.bf16.gmra.mrb[0].mxu0 %v2599
      %v2750 = vpop.f32.mrb[0].mxu0
      %v2751 = vadd.f32 %v2530, %v2750
      %v2752 = vpop.f32.mrb[0].mxu0
      %v2753 = vpop.f32.mrb[0].mxu0
      %v2754 = vadd.f32 %v2530, %v2753
      %v2755 = vpop.f32.mrb[0].mxu0
      %2756 = vmatprep.mubr.bf16.mxu0 0
      %2757 = vmatmul.mubr.bf16.gmra.mrb[0].mxu0 %v2602
      %v2758 = vpop.f32.mrb[0].mxu0
      %v2759 = vadd.f32 %v2530, %v2758
      %v2760 = vpop.f32.mrb[0].mxu0
      %v2761 = vpop.f32.mrb[0].mxu0
      %v2762 = vadd.f32 %v2530, %v2761
      %v2763 = vpop.f32.mrb[0].mxu0
      %2764 = vdwg.mxu0
      %vm2765 = vcmask 130048
      %2766 = vst.msk [vmem:[%s280] sm:$0xff] %vm2765, %v2639
      %2767 = vst.msk [vmem:[%s280 + $0x8] sm:$0xff] %vm2765, %v2642
      %2768 = vst.msk [vmem:[%s280 + $0x10] sm:$0xff] %vm2765, %v2647
      %2769 = vst.msk [vmem:[%s280 + $0x18] sm:$0xff] %vm2765, %v2650
      %2770 = vst.msk [vmem:[%s280 + $0x20] sm:$0xff] %vm2765, %v2655
      %2771 = vst.msk [vmem:[%s280 + $0x28] sm:$0xff] %vm2765, %v2658
      %2772 = vst.msk [vmem:[%s280 + $0x30] sm:$0xff] %vm2765, %v2663
      %2773 = vst.msk [vmem:[%s280 + $0x38] sm:$0xff] %vm2765, %v2666
      %2774 = vst.msk [vmem:[%s280 + $0x40] sm:$0xff] %vm2765, %v2671
      %2775 = vst.msk [vmem:[%s280 + $0x48] sm:$0xff] %vm2765, %v2674
      %2776 = vst.msk [vmem:[%s280 + $0x50] sm:$0xff] %vm2765, %v2679
      %2777 = vst.msk [vmem:[%s280 + $0x58] sm:$0xff] %vm2765, %v2682
      %2778 = vst.msk [vmem:[%s280 + $0x60] sm:$0xff] %vm2765, %v2687
      %2779 = vst.msk [vmem:[%s280 + $0x68] sm:$0xff] %vm2765, %v2690
      %2780 = vst.msk [vmem:[%s280 + $0x70] sm:$0xff] %vm2765, %v2695
      %2781 = vst.msk [vmem:[%s280 + $0x78] sm:$0xff] %vm2765, %v2698
      %2782 = vst.msk [vmem:[%s280 + $0x80] sm:$0xff] %vm2765, %v2703
      %2783 = vst.msk [vmem:[%s280 + $0x88] sm:$0xff] %vm2765, %v2706
      %2784 = vst.msk [vmem:[%s280 + $0x90] sm:$0xff] %vm2765, %v2711
      %2785 = vst.msk [vmem:[%s280 + $0x98] sm:$0xff] %vm2765, %v2714
      %2786 = vst.msk [vmem:[%s280 + $0xa0] sm:$0xff] %vm2765, %v2719
      %2787 = vst.msk [vmem:[%s280 + $0xa8] sm:$0xff] %vm2765, %v2722
      %2788 = vst.msk [vmem:[%s280 + $0xb0] sm:$0xff] %vm2765, %v2727
      %2789 = vst.msk [vmem:[%s280 + $0xb8] sm:$0xff] %vm2765, %v2730
      %2790 = vst.msk [vmem:[%s280 + $0xc0] sm:$0xff] %vm2765, %v2735
      %2791 = vst.msk [vmem:[%s280 + $0xc8] sm:$0xff] %vm2765, %v2738
      %2792 = vst.msk [vmem:[%s280 + $0xd0] sm:$0xff] %vm2765, %v2743
      %2793 = vst.msk [vmem:[%s280 + $0xd8] sm:$0xff] %vm2765, %v2746
      %2794 = vst.msk [vmem:[%s280 + $0xe0] sm:$0xff] %vm2765, %v2751
      %2795 = vst.msk [vmem:[%s280 + $0xe8] sm:$0xff] %vm2765, %v2754
      %2796 = vst.msk [vmem:[%s280 + $0xf0] sm:$0xff] %vm2765, %v2759
      %2797 = vst.msk [vmem:[%s280 + $0xf8] sm:$0xff] %vm2765, %v2762
      %s2798 = smul.u32 32, %s18
      %p2799 = scmp.lt.s32.totalorder %s2798, 127
      %s2800 = scalar_select %p2799, %s2798, 127
      %s2801 = smul.addr %s2800, 8
      %s2802 = scalar_lea.vmem %s7, %s2801
      // Predicated region
      $region49: #{tpu_custom_call.1} parent=47 // pred_check
        %p2803 = pneg %p188
      $region50: #{tpu_custom_call.1} parent=47 // pred_check_branch
        %2805 = sbr.rel (%p2803) target = $region52
      $region51: #{tpu_custom_call.1} parent=47 // pred_region
        %s2806 = smul.u32 32, %s18
      $region52: #{tpu_custom_call.1} parent=47 // pred_fallthru
        _
    $region48: #{tpu_custom_call.1} parent=5 // pred_fallthru
      _
    %p2807 = scmp.le.s32.totalorder 2, %s13
    // Predicated region
    $region53: #{tpu_custom_call.1} parent=5 // pred_check
      %p2808 = pneg %p2807
    $region54: #{tpu_custom_call.1} parent=5 // pred_check_branch
      %2810 = sbr.rel (%p2808) target = $region56
    $region55: #{tpu_custom_call.1} parent=5 // pred_region
      %s2811 = ssub.s32 %s13, 2
      // Predicated region
      $region57: #{tpu_custom_call.1} parent=55 // pred_check
        %p2812 = pneg %p194
      $region58: #{tpu_custom_call.1} parent=55 // pred_check_branch
        %2814 = sbr.rel (%p2812) target = $region60
      $region59: #{tpu_custom_call.1} parent=55 // pred_region
        %s2815 = smul.u32 32, %s19
        %p2816 = scmp.lt.s32.totalorder %s2815, 127
        %s2817 = scalar_select %p2816, %s2815, 127
        %s2818 = smul.addr %s2817, 8
        %s2819 = scalar_lea.vmem %s7, %s2818
      $region60: #{tpu_custom_call.1} parent=55 // pred_fallthru
        _
    $region56: #{tpu_custom_call.1} parent=5 // pred_fallthru
      _
  $region6: #{tpu_custom_call.1} parent=0 // loop_footer
    %s17 = sadd.s32 1, %s13
  $region7: #{tpu_custom_call.1} parent=0 // loop_footer_branch
    %12 = sbr.rel target = $region3
  $region8: #{tpu_custom_call.1} parent=0 // loop_exit
    _

</llo_original>
